<compile_context>
chip_gen: v6e
topology: v6e:2x2x1
jax: 0.10.0
libtpu: 0.0.40
codegen_flags: <defaults>
</compile_context>

<pallas_src>
import functools

import jax
import jax.numpy as jnp
from jax.experimental import pallas as pl
from jax.experimental.pallas import tpu as pltpu

EPS = 1e-5  # PyTorch BatchNorm2d default eps


def resblock_kernel(x1c_ref, xsc_ref,
                    w1_ref, s1_ref, b1_ref,
                    wsc_ref, ssc_ref, bsc_ref,
                    w2_ref, s2_ref, b2_ref,
                    o_ref, pad_ref, *, H, W):
    """One batch element per grid step; all matmuls on the MXU with f32 acc."""
    C = o_ref.shape[-1]
    HW = H * W

    # conv1 (3x3, stride+padding folded into the im2col slab) + bn1 + relu
    h1 = jnp.dot(x1c_ref[...], w1_ref[...], preferred_element_type=jnp.float32)
    h1 = jnp.maximum(h1 * s1_ref[...] + b1_ref[...], 0.0)              # (HW, C)

    # shortcut: 1x1 conv (stride folded in wrapper) + bn
    res = jnp.dot(xsc_ref[...], wsc_ref[...], preferred_element_type=jnp.float32)
    res = res * ssc_ref[...] + bsc_ref[...]                            # (HW, C)

    # conv2 (3x3, stride 1, padding 1): zero-padded VMEM scratch + 9 shifted matmuls
    pad_ref[...] = jnp.zeros_like(pad_ref)
    pad_ref[1:1 + H, 1:1 + W, :] = h1.reshape(H, W, C)
    acc = jnp.zeros((HW, C), jnp.float32)
    for dy in range(3):
        for dx in range(3):
            patch = pad_ref[dy:dy + H, dx:dx + W, :]                   # (H, W, C)
            acc = acc + jnp.dot(patch.reshape(HW, C), w2_ref[dy * 3 + dx],
                                preferred_element_type=jnp.float32)

    out = acc * s2_ref[...] + b2_ref[...] + res                        # bn2 + residual
    o_ref[...] = jnp.maximum(out, 0.0).astype(o_ref.dtype)             # final relu


@functools.partial(jax.jit, static_argnames=("stride",))
def resblock_forward(x_nchw, params, *, stride):
    """x_nchw: (B, Cin, H, W) float32, PyTorch layout. Returns (B, Cout, H', W')."""
    B, Cin, H, W = x_nchw.shape
    Cout = params["conv1_w"].shape[0]
    H_out = (H + 2 - 3) // stride + 1
    W_out = (W + 2 - 3) // stride + 1
    HW = H_out * W_out

    # NCHW -> NHWC (channels on the lane axis); zero-pad spatially for conv1.
    x = jnp.transpose(x_nchw, (0, 2, 3, 1)).astype(jnp.float32)
    xp = jnp.pad(x, ((0, 0), (1, 1), (1, 1), (0, 0)))

    # im2col slab for conv1: stride + padding handled here (layout plumbing only).
    cols = []
    for dy in range(3):
        for dx in range(3):
            cols.append(xp[:, dy:dy + (H_out - 1) * stride + 1:stride,
                           dx:dx + (W_out - 1) * stride + 1:stride, :])
    x1_cols = jnp.concatenate(cols, axis=-1).reshape(B, HW, 9 * Cin)

    # Shortcut input: 1x1 conv with stride == spatial subsample of x.
    x_sc = x[:, ::stride, ::stride, :].reshape(B, HW, Cin)

    # TODO(synk): training-mode BatchNorm (batch statistics + running-stat update)
    # is not implemented; eval-mode running stats are folded into scale/bias here.
    def fold_bn(conv_b, gamma, beta, mean, var):
        scale = gamma / jnp.sqrt(var + EPS)
        bias = beta + (conv_b - mean) * scale
        return (scale.reshape(1, Cout).astype(jnp.float32),
                bias.reshape(1, Cout).astype(jnp.float32))

    # Conv weights reordered to (kh, kw, cin, cout) so the kernel does x @ W.
    w1 = jnp.transpose(params["conv1_w"], (2, 3, 1, 0)).reshape(9 * Cin, Cout)
    s1, b1 = fold_bn(params["conv1_b"], params["bn1_g"], params["bn1_b"],
                     params["bn1_m"], params["bn1_v"])
    w2 = jnp.transpose(params["conv2_w"], (2, 3, 1, 0)).reshape(9, Cout, Cout)
    s2, b2 = fold_bn(params["conv2_b"], params["bn2_g"], params["bn2_b"],
                     params["bn2_m"], params["bn2_v"])

    if "sc_w" in params:        # downsampling / channel-changing shortcut
        wsc = params["sc_w"].reshape(Cout, Cin).T
        ssc, bsc = fold_bn(params["sc_b"], params["scbn_g"], params["scbn_b"],
                           params["scbn_m"], params["scbn_v"])
    else:                       # identity shortcut (stride==1 and Cin==Cout)
        wsc = jnp.eye(Cin, dtype=jnp.float32)
        ssc = jnp.ones((1, Cout), jnp.float32)
        bsc = jnp.zeros((1, Cout), jnp.float32)

    def resident(a):            # constant index_map -> stays VMEM-resident over batch
        nd = a.ndim
        return pl.BlockSpec(a.shape, lambda b, _n=nd: (0,) * _n)

    args = (x1_cols, x_sc, w1, s1, b1, wsc, ssc, bsc, w2, s2, b2)
    in_specs = [
        pl.BlockSpec((None, HW, 9 * Cin), lambda b: (b, 0, 0)),
        pl.BlockSpec((None, HW, Cin), lambda b: (b, 0, 0)),
        resident(w1), resident(s1), resident(b1),
        resident(wsc), resident(ssc), resident(bsc),
        resident(w2), resident(s2), resident(b2),
    ]

    out = pl.pallas_call(
        functools.partial(resblock_kernel, H=H_out, W=W_out),
        out_shape=jax.ShapeDtypeStruct((B, HW, Cout), jnp.float32),
        grid_spec=pltpu.PrefetchScalarGridSpec(
            num_scalar_prefetch=0,
            grid=(B,),
            in_specs=in_specs,
            out_specs=pl.BlockSpec((None, HW, Cout), lambda b: (b, 0, 0)),
            scratch_shapes=[pltpu.VMEM((H_out + 2, W_out + 2, Cout), jnp.float32)],
        ),
        compiler_params=pltpu.CompilerParams(
            dimension_semantics=("parallel",),      # v7x: shard batch over both TCs
            vmem_limit_bytes=32 * 1024 * 1024,      # fits v7x's 64 MiB physical VMEM
        ),
    )(*args)

    # (B, HW, Cout) -> NCHW to match the PyTorch module output.
    return jnp.transpose(out.reshape(B, H_out, W_out, Cout), (0, 3, 1, 2))


def init_params(key, cin, cout, stride):
    """Deterministic params mimicking PyTorch defaults, with non-trivial BN stats."""
    def uni(k, shape, bound):
        return jax.random.uniform(k, shape, jnp.float32, -bound, bound)

    ks = list(jax.random.split(key, 18))
    p = {}
    bound1 = 1.0 / (cin * 9) ** 0.5
    p["conv1_w"] = uni(ks[0], (cout, cin, 3, 3), bound1)
    p["conv1_b"] = uni(ks[1], (cout,), bound1)
    bound2 = 1.0 / (cout * 9) ** 0.5
    p["conv2_w"] = uni(ks[2], (cout, cout, 3, 3), bound2)
    p["conv2_b"] = uni(ks[3], (cout,), bound2)
    p["bn1_g"] = jax.random.uniform(ks[4], (cout,), jnp.float32, 0.5, 1.5)
    p["bn1_b"] = uni(ks[5], (cout,), 0.2)
    p["bn1_m"] = uni(ks[6], (cout,), 0.2)
    p["bn1_v"] = jax.random.uniform(ks[7], (cout,), jnp.float32, 0.5, 1.5)
    p["bn2_g"] = jax.random.uniform(ks[8], (cout,), jnp.float32, 0.5, 1.5)
    p["bn2_b"] = uni(ks[9], (cout,), 0.2)
    p["bn2_m"] = uni(ks[10], (cout,), 0.2)
    p["bn2_v"] = jax.random.uniform(ks[11], (cout,), jnp.float32, 0.5, 1.5)
    if stride != 1 or cin != cout:
        bs = 1.0 / cin ** 0.5
        p["sc_w"] = uni(ks[12], (cout, cin, 1, 1), bs)
        p["sc_b"] = uni(ks[13], (cout,), bs)
        p["scbn_g"] = jax.random.uniform(ks[14], (cout,), jnp.float32, 0.5, 1.5)
        p["scbn_b"] = uni(ks[15], (cout,), 0.2)
        p["scbn_m"] = uni(ks[16], (cout,), 0.2)
        p["scbn_v"] = jax.random.uniform(ks[17], (cout,), jnp.float32, 0.5, 1.5)
    return p


def reference_forward(x_nchw, p, *, stride):
    """Pure-JAX reference matching PyTorch eval-mode ResBlock_CIFAR semantics."""
    def conv(x, w, b, s, pad):
        y = jax.lax.conv_general_dilated(
            x, w, window_strides=(s, s), padding=pad,
            dimension_numbers=("NCHW", "OIHW", "NCHW"),
            precision=jax.lax.Precision.HIGHEST)
        return y + b.reshape(1, -1, 1, 1)

    def bn(y, g, beta, m, v):
        shp = (1, -1, 1, 1)
        return ((y - m.reshape(shp)) / jnp.sqrt(v.reshape(shp) + EPS)
                * g.reshape(shp) + beta.reshape(shp))

    h = jax.nn.relu(bn(conv(x_nchw, p["conv1_w"], p["conv1_b"], stride,
                            [(1, 1), (1, 1)]),
                       p["bn1_g"], p["bn1_b"], p["bn1_m"], p["bn1_v"]))
    h = bn(conv(h, p["conv2_w"], p["conv2_b"], 1, [(1, 1), (1, 1)]),
           p["bn2_g"], p["bn2_b"], p["bn2_m"], p["bn2_v"])
    if "sc_w" in p:
        res = bn(conv(x_nchw, p["sc_w"], p["sc_b"], stride, [(0, 0), (0, 0)]),
                 p["scbn_g"], p["scbn_b"], p["scbn_m"], p["scbn_v"])
    else:
        res = x_nchw
    return jax.nn.relu(h + res)


if __name__ == "__main__":
    key = jax.random.PRNGKey(0)
    B, C_IN, C_OUT, H, W, STRIDE = 2, 16, 32, 16, 16, 2   # downsampling resblock
    key, kx, kp = jax.random.split(key, 3)
    x = jax.random.normal(kx, (B, C_IN, H, W), jnp.float32)
    params = init_params(kp, C_IN, C_OUT, STRIDE)

    out = resblock_forward(x, params, stride=STRIDE)
    out = jax.block_until_ready(out)

    ref = reference_forward(x, params, stride=STRIDE)
    assert out.shape == ref.shape, (out.shape, ref.shape)
    max_err = float(jnp.max(jnp.abs(out - ref)))
    assert jnp.allclose(out, ref, atol=5e-3, rtol=5e-3), \
        f"mismatch vs JAX reference, max_err={max_err}"
    print("KERNEL_OK")
</pallas_src>

<mosaic_0001>
module attributes {stable_mosaic.version = 11 : i64} {
  func.func @resblock_kernel(%arg0: i32, %arg1: memref<1x64x144xf32, #tpu.memory_space<vmem>>, %arg2: memref<1x64x16xf32, #tpu.memory_space<vmem>>, %arg3: memref<144x32xf32, #tpu.memory_space<vmem>>, %arg4: memref<1x32xf32, #tpu.memory_space<vmem>>, %arg5: memref<1x32xf32, #tpu.memory_space<vmem>>, %arg6: memref<16x32xf32, #tpu.memory_space<vmem>>, %arg7: memref<1x32xf32, #tpu.memory_space<vmem>>, %arg8: memref<1x32xf32, #tpu.memory_space<vmem>>, %arg9: memref<9x32x32xf32, #tpu.memory_space<vmem>>, %arg10: memref<1x32xf32, #tpu.memory_space<vmem>>, %arg11: memref<1x32xf32, #tpu.memory_space<vmem>>, %arg12: memref<1x64x32xf32, #tpu.memory_space<vmem>>, %arg13: memref<10x10x32xf32, #tpu.memory_space<vmem>>) attributes {dimension_semantics = [#tpu.dimension_semantics<parallel>], iteration_bounds = array<i64: 2>, scalar_prefetch = 0 : i64, scratch_operands = 1 : i64, tpu.core_type = #tpu.core_type<tc>, window_params = [{transform_indices = @transform_0, window_bounds = array<i64: 1, 64, 144>}, {transform_indices = @transform_1, window_bounds = array<i64: 1, 64, 16>}, {pipeline_mode = #tpu.pipeline_mode<synchronous>, transform_indices = @transform_2, window_bounds = array<i64: 144, 32>}, {pipeline_mode = #tpu.pipeline_mode<synchronous>, transform_indices = @transform_3, window_bounds = array<i64: 1, 32>}, {pipeline_mode = #tpu.pipeline_mode<synchronous>, transform_indices = @transform_4, window_bounds = array<i64: 1, 32>}, {pipeline_mode = #tpu.pipeline_mode<synchronous>, transform_indices = @transform_5, window_bounds = array<i64: 16, 32>}, {pipeline_mode = #tpu.pipeline_mode<synchronous>, transform_indices = @transform_6, window_bounds = array<i64: 1, 32>}, {pipeline_mode = #tpu.pipeline_mode<synchronous>, transform_indices = @transform_7, window_bounds = array<i64: 1, 32>}, {pipeline_mode = #tpu.pipeline_mode<synchronous>, transform_indices = @transform_8, window_bounds = array<i64: 9, 32, 32>}, {pipeline_mode = #tpu.pipeline_mode<synchronous>, transform_indices = @transform_9, window_bounds = array<i64: 1, 32>}, {pipeline_mode = #tpu.pipeline_mode<synchronous>, transform_indices = @transform_10, window_bounds = array<i64: 1, 32>}, {transform_indices = @transform_11, window_bounds = array<i64: 1, 64, 32>}]} {
    %c0 = arith.constant 0 : index
    %c0_0 = arith.constant 0 : index
    %c0_1 = arith.constant 0 : index
    %0 = vector.load %arg1[%c0, %c0_0, %c0_1] : memref<1x64x144xf32, #tpu.memory_space<vmem>>, vector<1x64x144xf32>
    %1 = vector.shape_cast %0 : vector<1x64x144xf32> to vector<64x144xf32>
    %c0_2 = arith.constant 0 : index
    %c0_3 = arith.constant 0 : index
    %2 = vector.load %arg3[%c0_2, %c0_3] : memref<144x32xf32, #tpu.memory_space<vmem>>, vector<144x32xf32>
    %cst = arith.constant dense<0.000000e+00> : vector<64x32xf32>
    %3 = tpu.matmul %1, %2, %cst {dimension_numbers = #tpu.dot_dimension_numbers<[1], [0], [0], [1], [0, 0, 1, 1], [], []>} : vector<64x144xf32>, vector<144x32xf32>, vector<64x32xf32> -> vector<64x32xf32>
    %c0_4 = arith.constant 0 : index
    %c0_5 = arith.constant 0 : index
    %4 = vector.load %arg4[%c0_4, %c0_5] : memref<1x32xf32, #tpu.memory_space<vmem>>, vector<1x32xf32>
    %5 = vector.broadcast %4 : vector<1x32xf32> to vector<64x32xf32>
    %6 = arith.mulf %3, %5 : vector<64x32xf32>
    %c0_6 = arith.constant 0 : index
    %c0_7 = arith.constant 0 : index
    %7 = vector.load %arg5[%c0_6, %c0_7] : memref<1x32xf32, #tpu.memory_space<vmem>>, vector<1x32xf32>
    %8 = vector.broadcast %7 : vector<1x32xf32> to vector<64x32xf32>
    %9 = arith.addf %6, %8 : vector<64x32xf32>
    %cst_8 = arith.constant 0.000000e+00 : f32
    %10 = vector.broadcast %cst_8 : f32 to vector<64x32xf32>
    %11 = arith.maximumf %9, %10 : vector<64x32xf32>
    %c0_9 = arith.constant 0 : index
    %c0_10 = arith.constant 0 : index
    %c0_11 = arith.constant 0 : index
    %12 = vector.load %arg2[%c0_9, %c0_10, %c0_11] : memref<1x64x16xf32, #tpu.memory_space<vmem>>, vector<1x64x16xf32>
    %13 = vector.shape_cast %12 : vector<1x64x16xf32> to vector<64x16xf32>
    %c0_12 = arith.constant 0 : index
    %c0_13 = arith.constant 0 : index
    %14 = vector.load %arg6[%c0_12, %c0_13] : memref<16x32xf32, #tpu.memory_space<vmem>>, vector<16x32xf32>
    %cst_14 = arith.constant dense<0.000000e+00> : vector<64x32xf32>
    %15 = tpu.matmul %13, %14, %cst_14 {dimension_numbers = #tpu.dot_dimension_numbers<[1], [0], [0], [1], [0, 0, 1, 1], [], []>} : vector<64x16xf32>, vector<16x32xf32>, vector<64x32xf32> -> vector<64x32xf32>
    %c0_15 = arith.constant 0 : index
    %c0_16 = arith.constant 0 : index
    %16 = vector.load %arg7[%c0_15, %c0_16] : memref<1x32xf32, #tpu.memory_space<vmem>>, vector<1x32xf32>
    %17 = vector.broadcast %16 : vector<1x32xf32> to vector<64x32xf32>
    %18 = arith.mulf %15, %17 : vector<64x32xf32>
    %c0_17 = arith.constant 0 : index
    %c0_18 = arith.constant 0 : index
    %19 = vector.load %arg8[%c0_17, %c0_18] : memref<1x32xf32, #tpu.memory_space<vmem>>, vector<1x32xf32>
    %20 = vector.broadcast %19 : vector<1x32xf32> to vector<64x32xf32>
    %21 = arith.addf %18, %20 : vector<64x32xf32>
    %cst_19 = arith.constant 0.000000e+00 : f32
    %22 = vector.broadcast %cst_19 : f32 to vector<10x10x32xf32>
    %c0_20 = arith.constant 0 : index
    %c0_21 = arith.constant 0 : index
    %c0_22 = arith.constant 0 : index
    %23 = vector.load %arg13[%c0_20, %c0_21, %c0_22] : memref<10x10x32xf32, #tpu.memory_space<vmem>>, vector<10x10x32xf32>
    tpu.vector_store %arg13[%c0_20, %c0_21, %c0_22], %22 {strides = array<i32>} : memref<10x10x32xf32, #tpu.memory_space<vmem>>, vector<10x10x32xf32>,
    %24 = vector.shape_cast %11 : vector<64x32xf32> to vector<8x8x32xf32>
    %c1 = arith.constant 1 : index
    %c1_23 = arith.constant 1 : index
    %c0_24 = arith.constant 0 : index
    %25 = vector.load %arg13[%c1, %c1_23, %c0_24] : memref<10x10x32xf32, #tpu.memory_space<vmem>>, vector<8x8x32xf32>
    tpu.vector_store %arg13[%c1, %c1_23, %c0_24], %24 {strides = array<i32>} : memref<10x10x32xf32, #tpu.memory_space<vmem>>, vector<8x8x32xf32>,
    %cst_25 = arith.constant 0.000000e+00 : f32
    %26 = vector.broadcast %cst_25 : f32 to vector<64x32xf32>
    %c0_26 = arith.constant 0 : index
    %c0_27 = arith.constant 0 : index
    %c0_28 = arith.constant 0 : index
    %27 = vector.load %arg13[%c0_26, %c0_27, %c0_28] : memref<10x10x32xf32, #tpu.memory_space<vmem>>, vector<8x8x32xf32>
    %28 = vector.shape_cast %27 : vector<8x8x32xf32> to vector<64x32xf32>
    %c0_29 = arith.constant 0 : index
    %c0_30 = arith.constant 0 : index
    %c0_31 = arith.constant 0 : index
    %29 = vector.load %arg9[%c0_29, %c0_30, %c0_31] : memref<9x32x32xf32, #tpu.memory_space<vmem>>, vector<1x32x32xf32>
    %30 = vector.shape_cast %29 : vector<1x32x32xf32> to vector<32x32xf32>
    %cst_32 = arith.constant dense<0.000000e+00> : vector<64x32xf32>
    %31 = tpu.matmul %28, %30, %cst_32 {dimension_numbers = #tpu.dot_dimension_numbers<[1], [0], [0], [1], [0, 0, 1, 1], [], []>} : vector<64x32xf32>, vector<32x32xf32>, vector<64x32xf32> -> vector<64x32xf32>
    %32 = arith.addf %26, %31 : vector<64x32xf32>
    %c0_33 = arith.constant 0 : index
    %c1_34 = arith.constant 1 : index
    %c0_35 = arith.constant 0 : index
    %33 = vector.load %arg13[%c0_33, %c1_34, %c0_35] : memref<10x10x32xf32, #tpu.memory_space<vmem>>, vector<8x8x32xf32>
    %34 = vector.shape_cast %33 : vector<8x8x32xf32> to vector<64x32xf32>
    %c1_36 = arith.constant 1 : index
    %c0_37 = arith.constant 0 : index
    %c0_38 = arith.constant 0 : index
    %35 = vector.load %arg9[%c1_36, %c0_37, %c0_38] : memref<9x32x32xf32, #tpu.memory_space<vmem>>, vector<1x32x32xf32>
    %36 = vector.shape_cast %35 : vector<1x32x32xf32> to vector<32x32xf32>
    %cst_39 = arith.constant dense<0.000000e+00> : vector<64x32xf32>
    %37 = tpu.matmul %34, %36, %cst_39 {dimension_numbers = #tpu.dot_dimension_numbers<[1], [0], [0], [1], [0, 0, 1, 1], [], []>} : vector<64x32xf32>, vector<32x32xf32>, vector<64x32xf32> -> vector<64x32xf32>
    %38 = arith.addf %32, %37 : vector<64x32xf32>
    %c0_40 = arith.constant 0 : index
    %c2 = arith.constant 2 : index
    %c0_41 = arith.constant 0 : index
    %39 = vector.load %arg13[%c0_40, %c2, %c0_41] : memref<10x10x32xf32, #tpu.memory_space<vmem>>, vector<8x8x32xf32>
    %40 = vector.shape_cast %39 : vector<8x8x32xf32> to vector<64x32xf32>
    %c2_42 = arith.constant 2 : index
    %c0_43 = arith.constant 0 : index
    %c0_44 = arith.constant 0 : index
    %41 = vector.load %arg9[%c2_42, %c0_43, %c0_44] : memref<9x32x32xf32, #tpu.memory_space<vmem>>, vector<1x32x32xf32>
    %42 = vector.shape_cast %41 : vector<1x32x32xf32> to vector<32x32xf32>
    %cst_45 = arith.constant dense<0.000000e+00> : vector<64x32xf32>
    %43 = tpu.matmul %40, %42, %cst_45 {dimension_numbers = #tpu.dot_dimension_numbers<[1], [0], [0], [1], [0, 0, 1, 1], [], []>} : vector<64x32xf32>, vector<32x32xf32>, vector<64x32xf32> -> vector<64x32xf32>
    %44 = arith.addf %38, %43 : vector<64x32xf32>
    %c1_46 = arith.constant 1 : index
    %c0_47 = arith.constant 0 : index
    %c0_48 = arith.constant 0 : index
    %45 = vector.load %arg13[%c1_46, %c0_47, %c0_48] : memref<10x10x32xf32, #tpu.memory_space<vmem>>, vector<8x8x32xf32>
    %46 = vector.shape_cast %45 : vector<8x8x32xf32> to vector<64x32xf32>
    %c3 = arith.constant 3 : index
    %c0_49 = arith.constant 0 : index
    %c0_50 = arith.constant 0 : index
    %47 = vector.load %arg9[%c3, %c0_49, %c0_50] : memref<9x32x32xf32, #tpu.memory_space<vmem>>, vector<1x32x32xf32>
    %48 = vector.shape_cast %47 : vector<1x32x32xf32> to vector<32x32xf32>
    %cst_51 = arith.constant dense<0.000000e+00> : vector<64x32xf32>
    %49 = tpu.matmul %46, %48, %cst_51 {dimension_numbers = #tpu.dot_dimension_numbers<[1], [0], [0], [1], [0, 0, 1, 1], [], []>} : vector<64x32xf32>, vector<32x32xf32>, vector<64x32xf32> -> vector<64x32xf32>
    %50 = arith.addf %44, %49 : vector<64x32xf32>
    %c1_52 = arith.constant 1 : index
    %c1_53 = arith.constant 1 : index
    %c0_54 = arith.constant 0 : index
    %51 = vector.load %arg13[%c1_52, %c1_53, %c0_54] : memref<10x10x32xf32, #tpu.memory_space<vmem>>, vector<8x8x32xf32>
    %52 = vector.shape_cast %51 : vector<8x8x32xf32> to vector<64x32xf32>
    %c4 = arith.constant 4 : index
    %c0_55 = arith.constant 0 : index
    %c0_56 = arith.constant 0 : index
    %53 = vector.load %arg9[%c4, %c0_55, %c0_56] : memref<9x32x32xf32, #tpu.memory_space<vmem>>, vector<1x32x32xf32>
    %54 = vector.shape_cast %53 : vector<1x32x32xf32> to vector<32x32xf32>
    %cst_57 = arith.constant dense<0.000000e+00> : vector<64x32xf32>
    %55 = tpu.matmul %52, %54, %cst_57 {dimension_numbers = #tpu.dot_dimension_numbers<[1], [0], [0], [1], [0, 0, 1, 1], [], []>} : vector<64x32xf32>, vector<32x32xf32>, vector<64x32xf32> -> vector<64x32xf32>
    %56 = arith.addf %50, %55 : vector<64x32xf32>
    %c1_58 = arith.constant 1 : index
    %c2_59 = arith.constant 2 : index
    %c0_60 = arith.constant 0 : index
    %57 = vector.load %arg13[%c1_58, %c2_59, %c0_60] : memref<10x10x32xf32, #tpu.memory_space<vmem>>, vector<8x8x32xf32>
    %58 = vector.shape_cast %57 : vector<8x8x32xf32> to vector<64x32xf32>
    %c5 = arith.constant 5 : index
    %c0_61 = arith.constant 0 : index
    %c0_62 = arith.constant 0 : index
    %59 = vector.load %arg9[%c5, %c0_61, %c0_62] : memref<9x32x32xf32, #tpu.memory_space<vmem>>, vector<1x32x32xf32>
    %60 = vector.shape_cast %59 : vector<1x32x32xf32> to vector<32x32xf32>
    %cst_63 = arith.constant dense<0.000000e+00> : vector<64x32xf32>
    %61 = tpu.matmul %58, %60, %cst_63 {dimension_numbers = #tpu.dot_dimension_numbers<[1], [0], [0], [1], [0, 0, 1, 1], [], []>} : vector<64x32xf32>, vector<32x32xf32>, vector<64x32xf32> -> vector<64x32xf32>
    %62 = arith.addf %56, %61 : vector<64x32xf32>
    %c2_64 = arith.constant 2 : index
    %c0_65 = arith.constant 0 : index
    %c0_66 = arith.constant 0 : index
    %63 = vector.load %arg13[%c2_64, %c0_65, %c0_66] : memref<10x10x32xf32, #tpu.memory_space<vmem>>, vector<8x8x32xf32>
    %64 = vector.shape_cast %63 : vector<8x8x32xf32> to vector<64x32xf32>
    %c6 = arith.constant 6 : index
    %c0_67 = arith.constant 0 : index
    %c0_68 = arith.constant 0 : index
    %65 = vector.load %arg9[%c6, %c0_67, %c0_68] : memref<9x32x32xf32, #tpu.memory_space<vmem>>, vector<1x32x32xf32>
    %66 = vector.shape_cast %65 : vector<1x32x32xf32> to vector<32x32xf32>
    %cst_69 = arith.constant dense<0.000000e+00> : vector<64x32xf32>
    %67 = tpu.matmul %64, %66, %cst_69 {dimension_numbers = #tpu.dot_dimension_numbers<[1], [0], [0], [1], [0, 0, 1, 1], [], []>} : vector<64x32xf32>, vector<32x32xf32>, vector<64x32xf32> -> vector<64x32xf32>
    %68 = arith.addf %62, %67 : vector<64x32xf32>
    %c2_70 = arith.constant 2 : index
    %c1_71 = arith.constant 1 : index
    %c0_72 = arith.constant 0 : index
    %69 = vector.load %arg13[%c2_70, %c1_71, %c0_72] : memref<10x10x32xf32, #tpu.memory_space<vmem>>, vector<8x8x32xf32>
    %70 = vector.shape_cast %69 : vector<8x8x32xf32> to vector<64x32xf32>
    %c7 = arith.constant 7 : index
    %c0_73 = arith.constant 0 : index
    %c0_74 = arith.constant 0 : index
    %71 = vector.load %arg9[%c7, %c0_73, %c0_74] : memref<9x32x32xf32, #tpu.memory_space<vmem>>, vector<1x32x32xf32>
    %72 = vector.shape_cast %71 : vector<1x32x32xf32> to vector<32x32xf32>
    %cst_75 = arith.constant dense<0.000000e+00> : vector<64x32xf32>
    %73 = tpu.matmul %70, %72, %cst_75 {dimension_numbers = #tpu.dot_dimension_numbers<[1], [0], [0], [1], [0, 0, 1, 1], [], []>} : vector<64x32xf32>, vector<32x32xf32>, vector<64x32xf32> -> vector<64x32xf32>
    %74 = arith.addf %68, %73 : vector<64x32xf32>
    %c2_76 = arith.constant 2 : index
    %c2_77 = arith.constant 2 : index
    %c0_78 = arith.constant 0 : index
    %75 = vector.load %arg13[%c2_76, %c2_77, %c0_78] : memref<10x10x32xf32, #tpu.memory_space<vmem>>, vector<8x8x32xf32>
    %76 = vector.shape_cast %75 : vector<8x8x32xf32> to vector<64x32xf32>
    %c8 = arith.constant 8 : index
    %c0_79 = arith.constant 0 : index
    %c0_80 = arith.constant 0 : index
    %77 = vector.load %arg9[%c8, %c0_79, %c0_80] : memref<9x32x32xf32, #tpu.memory_space<vmem>>, vector<1x32x32xf32>
    %78 = vector.shape_cast %77 : vector<1x32x32xf32> to vector<32x32xf32>
    %cst_81 = arith.constant dense<0.000000e+00> : vector<64x32xf32>
    %79 = tpu.matmul %76, %78, %cst_81 {dimension_numbers = #tpu.dot_dimension_numbers<[1], [0], [0], [1], [0, 0, 1, 1], [], []>} : vector<64x32xf32>, vector<32x32xf32>, vector<64x32xf32> -> vector<64x32xf32>
    %80 = arith.addf %74, %79 : vector<64x32xf32>
    %c0_82 = arith.constant 0 : index
    %c0_83 = arith.constant 0 : index
    %81 = vector.load %arg10[%c0_82, %c0_83] : memref<1x32xf32, #tpu.memory_space<vmem>>, vector<1x32xf32>
    %82 = vector.broadcast %81 : vector<1x32xf32> to vector<64x32xf32>
    %83 = arith.mulf %80, %82 : vector<64x32xf32>
    %c0_84 = arith.constant 0 : index
    %c0_85 = arith.constant 0 : index
    %84 = vector.load %arg11[%c0_84, %c0_85] : memref<1x32xf32, #tpu.memory_space<vmem>>, vector<1x32xf32>
    %85 = vector.broadcast %84 : vector<1x32xf32> to vector<64x32xf32>
    %86 = arith.addf %83, %85 : vector<64x32xf32>
    %87 = arith.addf %86, %21 : vector<64x32xf32>
    %cst_86 = arith.constant 0.000000e+00 : f32
    %88 = vector.broadcast %cst_86 : f32 to vector<64x32xf32>
    %89 = arith.maximumf %87, %88 : vector<64x32xf32>
    %c0_87 = arith.constant 0 : index
    %c0_88 = arith.constant 0 : index
    %c0_89 = arith.constant 0 : index
    %90 = vector.load %arg12[%c0_87, %c0_88, %c0_89] : memref<1x64x32xf32, #tpu.memory_space<vmem>>, vector<1x64x32xf32>
    %91 = vector.shape_cast %90 : vector<1x64x32xf32> to vector<64x32xf32>
    %92 = vector.shape_cast %89 : vector<64x32xf32> to vector<1x64x32xf32>
    tpu.vector_store %arg12[%c0_87, %c0_88, %c0_89], %92 {strides = array<i32>} : memref<1x64x32xf32, #tpu.memory_space<vmem>>, vector<1x64x32xf32>,
    return
  }
  func.func @transform_0(%arg0: i32) -> (i32, i32, i32) {
    %c0_i32 = arith.constant 0 : i32
    %c0_i32_0 = arith.constant 0 : i32
    %c0_i32_1 = arith.constant 0 : i32
    return %arg0, %c0_i32, %c0_i32_0 : i32, i32, i32
  }
  func.func @transform_1(%arg0: i32) -> (i32, i32, i32) {
    %c0_i32 = arith.constant 0 : i32
    %c0_i32_0 = arith.constant 0 : i32
    %c0_i32_1 = arith.constant 0 : i32
    return %arg0, %c0_i32, %c0_i32_0 : i32, i32, i32
  }
  func.func @transform_2(%arg0: i32) -> (i32, i32) {
    %c0_i32 = arith.constant 0 : i32
    %c0_i32_0 = arith.constant 0 : i32
    %c0_i32_1 = arith.constant 0 : i32
    return %c0_i32, %c0_i32_0 : i32, i32
  }
  func.func @transform_3(%arg0: i32) -> (i32, i32) {
    %c0_i32 = arith.constant 0 : i32
    %c0_i32_0 = arith.constant 0 : i32
    %c0_i32_1 = arith.constant 0 : i32
    return %c0_i32, %c0_i32_0 : i32, i32
  }
  func.func @transform_4(%arg0: i32) -> (i32, i32) {
    %c0_i32 = arith.constant 0 : i32
    %c0_i32_0 = arith.constant 0 : i32
    %c0_i32_1 = arith.constant 0 : i32
    return %c0_i32, %c0_i32_0 : i32, i32
  }
  func.func @transform_5(%arg0: i32) -> (i32, i32) {
    %c0_i32 = arith.constant 0 : i32
    %c0_i32_0 = arith.constant 0 : i32
    %c0_i32_1 = arith.constant 0 : i32
    return %c0_i32, %c0_i32_0 : i32, i32
  }
  func.func @transform_6(%arg0: i32) -> (i32, i32) {
    %c0_i32 = arith.constant 0 : i32
    %c0_i32_0 = arith.constant 0 : i32
    %c0_i32_1 = arith.constant 0 : i32
    return %c0_i32, %c0_i32_0 : i32, i32
  }
  func.func @transform_7(%arg0: i32) -> (i32, i32) {
    %c0_i32 = arith.constant 0 : i32
    %c0_i32_0 = arith.constant 0 : i32
    %c0_i32_1 = arith.constant 0 : i32
    return %c0_i32, %c0_i32_0 : i32, i32
  }
  func.func @transform_8(%arg0: i32) -> (i32, i32, i32) {
    %c0_i32 = arith.constant 0 : i32
    %c0_i32_0 = arith.constant 0 : i32
    %c0_i32_1 = arith.constant 0 : i32
    %c0_i32_2 = arith.constant 0 : i32
    return %c0_i32, %c0_i32_0, %c0_i32_1 : i32, i32, i32
  }
  func.func @transform_9(%arg0: i32) -> (i32, i32) {
    %c0_i32 = arith.constant 0 : i32
    %c0_i32_0 = arith.constant 0 : i32
    %c0_i32_1 = arith.constant 0 : i32
    return %c0_i32, %c0_i32_0 : i32, i32
  }
  func.func @transform_10(%arg0: i32) -> (i32, i32) {
    %c0_i32 = arith.constant 0 : i32
    %c0_i32_0 = arith.constant 0 : i32
    %c0_i32_1 = arith.constant 0 : i32
    return %c0_i32, %c0_i32_0 : i32, i32
  }
  func.func @transform_11(%arg0: i32) -> (i32, i32, i32) {
    %c0_i32 = arith.constant 0 : i32
    %c0_i32_0 = arith.constant 0 : i32
    %c0_i32_1 = arith.constant 0 : i32
    return %arg0, %c0_i32, %c0_i32_0 : i32, i32, i32
  }
}

</mosaic_0001>

<llo_original>
// kernel: resblock_forward.1
$region0: #{resblock_forward.1}
  #allocation0 [shape = 'u32[]', space=smem, size = 0x4, offset = 0x4, fixed_abs, tag = 'smem constant byte address 0x4 - core index']
  #allocation1 [shape = 'u32[144,128]{1,0:T(1,128)}', space=vmem, size = 0x12000, scoped, tag = 'internal scratch']
  #allocation2 [shape = 'f32[10,10,32]{2,1,0:T(8,128)}', space=vmem, size = 0x14000, scoped, tag = 'scratch operand']
  %s0 = inlined_call_operand.vmem [shape: f32[2,64,144], index: 0, kind: input, shape index: {}]
  %s1 = inlined_call_operand.vmem [shape: f32[2,64,16], index: 1, kind: input, shape index: {}]
  %s2 = inlined_call_operand.vmem [shape: f32[144,32], index: 2, kind: input, shape index: {}]
  %s3 = inlined_call_operand.vmem [shape: f32[1,32], index: 3, kind: input, shape index: {}]
  %s4 = inlined_call_operand.vmem [shape: f32[1,32], index: 4, kind: input, shape index: {}]
  %s5 = inlined_call_operand.vmem [shape: f32[16,32], index: 5, kind: input, shape index: {}]
  %s6 = inlined_call_operand.vmem [shape: f32[1,32], index: 6, kind: input, shape index: {}]
  %s7 = inlined_call_operand.vmem [shape: f32[1,32], index: 7, kind: input, shape index: {}]
  %s8 = inlined_call_operand.vmem [shape: f32[9,32,32], index: 8, kind: input, shape index: {}]
  %s9 = inlined_call_operand.vmem [shape: f32[1,32], index: 9, kind: input, shape index: {}]
  %s10 = inlined_call_operand.vmem [shape: f32[1,32], index: 10, kind: input, shape index: {}]
  %s11 = inlined_call_operand.hbm [shape: f32[2,64,32], index: 11, kind: output, shape index: {}]
  %s12 = sld [smem:[#allocation0]]
  $region77: #{resblock_forward.1} parent=0
    _
  %s14 = ssub.s32 1, %s12
  %s15 = scalar_select 0, %s14, %s12
  $region1: #{resblock_forward.1} parent=0
    #allocation3 [shape = 'u8[65536]{0}', space=vmem, size = 0x10000, scoped, tag = 'output window, operand 0']
    #allocation4 [shape = 's32[2]{0}', space=sflag, size = 0x8, scoped, tag = 'scoped memory for resblock_forward.1']
    %16 = vsyncpa [#allocation4], 0
    %s17 = scalar_lea.sflag [#allocation4], 1
    %18 = vsyncpa %s17, 0
    loop: start=0, step=1, limit=4
    $region2: #{resblock_forward.1} parent=1 // loop_pre_header
      _
    $region3: #{resblock_forward.1} parent=1 // loop_header
      %s20 = sphi 0, %s24
      %p21 = scmp.ge.s32.totalorder %s20, 4
      %s30 = sphi 0, %s32
      %s33 = sphi 0, %s30
      %s34 = sphi 0, %s33
      %s50 = sphi 0, %s34
      %s56 = sphi 0, %s58
      %s59 = sphi 0, %s56
      %s60 = sphi 0, %s59
      %s76 = sphi 0, %s60
      %s80 = sphi 0, %s80
      %s82 = sphi 0, %s80
      %s83 = sphi 0, %s82
      %s97 = sphi 0, %s83
      %s101 = sphi 0, %s101
      %s103 = sphi 0, %s101
      %s104 = sphi 0, %s103
      %s118 = sphi 0, %s104
      %s122 = sphi 0, %s122
      %s124 = sphi 0, %s122
      %s125 = sphi 0, %s124
      %s139 = sphi 0, %s125
      %s143 = sphi 0, %s143
      %s145 = sphi 0, %s143
      %s146 = sphi 0, %s145
      %s160 = sphi 0, %s146
      %s164 = sphi 0, %s164
      %s166 = sphi 0, %s164
      %s167 = sphi 0, %s166
      %s181 = sphi 0, %s167
      %s185 = sphi 0, %s185
      %s187 = sphi 0, %s185
      %s188 = sphi 0, %s187
      %s202 = sphi 0, %s188
      %s206 = sphi 0, %s206
      %s208 = sphi 0, %s206
      %s209 = sphi 0, %s208
      %s223 = sphi 0, %s209
      %s227 = sphi 0, %s227
      %s229 = sphi 0, %s227
      %s230 = sphi 0, %s229
      %s244 = sphi 0, %s230
      %s248 = sphi 0, %s248
      %s250 = sphi 0, %s248
      %s251 = sphi 0, %s250
      %s265 = sphi 0, %s251
      %s271 = sphi 0, %s273
      %s274 = sphi 0, %s271
      %s275 = sphi 0, %s274
      %s291 = sphi 0, %s275
    $region4: #{resblock_forward.1} parent=1 // loop_header_branch
      %23 = sbr.rel (%p21) target = $region8
    $region5: #{resblock_forward.1} parent=1 // loop_body
      %s25 = ssub.s32 %s20, 1
      %s26 = ssub.s32 %s20, 2
      %s27 = sadd.s32 %s20, 1
      %s28 = ssub.s32 %s20, %s27
      %p29 = scmp.eq.s32.totalorder %s28, 0
      %s31 = sadd.s32 %s30, 1
      %s32 = scalar_select %p29, %s30, %s31
      %p35 = pneg %p29
      %p36 = scmp.eq.s32.totalorder %s20, 1
      %p37 = por %p35, %p36
      %p38 = scmp.ne.s32.totalorder %s30, %s33
      %p39 = scmp.eq.s32.totalorder %s20, 0
      %p40 = por %p38, %p39
      %p41 = scmp.ne.s32.totalorder %s30, %s33
      %p42 = scmp.eq.s32.totalorder %s25, 1
      %p43 = por %p41, %p42
      %p44 = scmp.ne.s32.totalorder %s33, %s34
      %p45 = scmp.eq.s32.totalorder %s25, 0
      %p46 = por %p44, %p45
      %p47 = scmp.ne.s32.totalorder %s33, %s34
      %p48 = scmp.eq.s32.totalorder %s26, 1
      %p49 = por %p47, %p48
      %p51 = scmp.ne.s32.totalorder %s34, %s50
      %p52 = scmp.eq.s32.totalorder %s26, 0
      %p53 = por %p51, %p52
      %s54 = ssub.s32 %s20, %s27
      %p55 = scmp.eq.s32.totalorder %s54, 0
      %s57 = sadd.s32 %s56, 1
      %s58 = scalar_select %p55, %s56, %s57
      %p61 = pneg %p55
      %p62 = scmp.eq.s32.totalorder %s20, 1
      %p63 = por %p61, %p62
      %p64 = scmp.ne.s32.totalorder %s56, %s59
      %p65 = scmp.eq.s32.totalorder %s20, 0
      %p66 = por %p64, %p65
      %p67 = scmp.ne.s32.totalorder %s56, %s59
      %p68 = scmp.eq.s32.totalorder %s25, 1
      %p69 = por %p67, %p68
      %p70 = scmp.ne.s32.totalorder %s59, %s60
      %p71 = scmp.eq.s32.totalorder %s25, 0
      %p72 = por %p70, %p71
      %p73 = scmp.ne.s32.totalorder %s59, %s60
      %p74 = scmp.eq.s32.totalorder %s26, 1
      %p75 = por %p73, %p74
      %p77 = scmp.ne.s32.totalorder %s60, %s76
      %p78 = scmp.eq.s32.totalorder %s26, 0
      %p79 = por %p77, %p78
      %s81 = sadd.s32 %s80, 1
      %p84 = scmp.eq.s32.totalorder %s20, 1
      %p85 = scmp.ne.s32.totalorder %s80, %s82
      %p86 = scmp.eq.s32.totalorder %s20, 0
      %p87 = por %p85, %p86
      %p88 = scmp.ne.s32.totalorder %s80, %s82
      %p89 = scmp.eq.s32.totalorder %s25, 1
      %p90 = por %p88, %p89
      %p91 = scmp.ne.s32.totalorder %s82, %s83
      %p92 = scmp.eq.s32.totalorder %s25, 0
      %p93 = por %p91, %p92
      %p94 = scmp.ne.s32.totalorder %s82, %s83
      %p95 = scmp.eq.s32.totalorder %s26, 1
      %p96 = por %p94, %p95
      %p98 = scmp.ne.s32.totalorder %s83, %s97
      %p99 = scmp.eq.s32.totalorder %s26, 0
      %p100 = por %p98, %p99
      %s102 = sadd.s32 %s101, 1
      %p105 = scmp.eq.s32.totalorder %s20, 1
      %p106 = scmp.ne.s32.totalorder %s101, %s103
      %p107 = scmp.eq.s32.totalorder %s20, 0
      %p108 = por %p106, %p107
      %p109 = scmp.ne.s32.totalorder %s101, %s103
      %p110 = scmp.eq.s32.totalorder %s25, 1
      %p111 = por %p109, %p110
      %p112 = scmp.ne.s32.totalorder %s103, %s104
      %p113 = scmp.eq.s32.totalorder %s25, 0
      %p114 = por %p112, %p113
      %p115 = scmp.ne.s32.totalorder %s103, %s104
      %p116 = scmp.eq.s32.totalorder %s26, 1
      %p117 = por %p115, %p116
      %p119 = scmp.ne.s32.totalorder %s104, %s118
      %p120 = scmp.eq.s32.totalorder %s26, 0
      %p121 = por %p119, %p120
      %s123 = sadd.s32 %s122, 1
      %p126 = scmp.eq.s32.totalorder %s20, 1
      %p127 = scmp.ne.s32.totalorder %s122, %s124
      %p128 = scmp.eq.s32.totalorder %s20, 0
      %p129 = por %p127, %p128
      %p130 = scmp.ne.s32.totalorder %s122, %s124
      %p131 = scmp.eq.s32.totalorder %s25, 1
      %p132 = por %p130, %p131
      %p133 = scmp.ne.s32.totalorder %s124, %s125
      %p134 = scmp.eq.s32.totalorder %s25, 0
      %p135 = por %p133, %p134
      %p136 = scmp.ne.s32.totalorder %s124, %s125
      %p137 = scmp.eq.s32.totalorder %s26, 1
      %p138 = por %p136, %p137
      %p140 = scmp.ne.s32.totalorder %s125, %s139
      %p141 = scmp.eq.s32.totalorder %s26, 0
      %p142 = por %p140, %p141
      %s144 = sadd.s32 %s143, 1
      %p147 = scmp.eq.s32.totalorder %s20, 1
      %p148 = scmp.ne.s32.totalorder %s143, %s145
      %p149 = scmp.eq.s32.totalorder %s20, 0
      %p150 = por %p148, %p149
      %p151 = scmp.ne.s32.totalorder %s143, %s145
      %p152 = scmp.eq.s32.totalorder %s25, 1
      %p153 = por %p151, %p152
      %p154 = scmp.ne.s32.totalorder %s145, %s146
      %p155 = scmp.eq.s32.totalorder %s25, 0
      %p156 = por %p154, %p155
      %p157 = scmp.ne.s32.totalorder %s145, %s146
      %p158 = scmp.eq.s32.totalorder %s26, 1
      %p159 = por %p157, %p158
      %p161 = scmp.ne.s32.totalorder %s146, %s160
      %p162 = scmp.eq.s32.totalorder %s26, 0
      %p163 = por %p161, %p162
      %s165 = sadd.s32 %s164, 1
      %p168 = scmp.eq.s32.totalorder %s20, 1
      %p169 = scmp.ne.s32.totalorder %s164, %s166
      %p170 = scmp.eq.s32.totalorder %s20, 0
      %p171 = por %p169, %p170
      %p172 = scmp.ne.s32.totalorder %s164, %s166
      %p173 = scmp.eq.s32.totalorder %s25, 1
      %p174 = por %p172, %p173
      %p175 = scmp.ne.s32.totalorder %s166, %s167
      %p176 = scmp.eq.s32.totalorder %s25, 0
      %p177 = por %p175, %p176
      %p178 = scmp.ne.s32.totalorder %s166, %s167
      %p179 = scmp.eq.s32.totalorder %s26, 1
      %p180 = por %p178, %p179
      %p182 = scmp.ne.s32.totalorder %s167, %s181
      %p183 = scmp.eq.s32.totalorder %s26, 0
      %p184 = por %p182, %p183
      %s186 = sadd.s32 %s185, 1
      %p189 = scmp.eq.s32.totalorder %s20, 1
      %p190 = scmp.ne.s32.totalorder %s185, %s187
      %p191 = scmp.eq.s32.totalorder %s20, 0
      %p192 = por %p190, %p191
      %p193 = scmp.ne.s32.totalorder %s185, %s187
      %p194 = scmp.eq.s32.totalorder %s25, 1
      %p195 = por %p193, %p194
      %p196 = scmp.ne.s32.totalorder %s187, %s188
      %p197 = scmp.eq.s32.totalorder %s25, 0
      %p198 = por %p196, %p197
      %p199 = scmp.ne.s32.totalorder %s187, %s188
      %p200 = scmp.eq.s32.totalorder %s26, 1
      %p201 = por %p199, %p200
      %p203 = scmp.ne.s32.totalorder %s188, %s202
      %p204 = scmp.eq.s32.totalorder %s26, 0
      %p205 = por %p203, %p204
      %s207 = sadd.s32 %s206, 1
      %p210 = scmp.eq.s32.totalorder %s20, 1
      %p211 = scmp.ne.s32.totalorder %s206, %s208
      %p212 = scmp.eq.s32.totalorder %s20, 0
      %p213 = por %p211, %p212
      %p214 = scmp.ne.s32.totalorder %s206, %s208
      %p215 = scmp.eq.s32.totalorder %s25, 1
      %p216 = por %p214, %p215
      %p217 = scmp.ne.s32.totalorder %s208, %s209
      %p218 = scmp.eq.s32.totalorder %s25, 0
      %p219 = por %p217, %p218
      %p220 = scmp.ne.s32.totalorder %s208, %s209
      %p221 = scmp.eq.s32.totalorder %s26, 1
      %p222 = por %p220, %p221
      %p224 = scmp.ne.s32.totalorder %s209, %s223
      %p225 = scmp.eq.s32.totalorder %s26, 0
      %p226 = por %p224, %p225
      %s228 = sadd.s32 %s227, 1
      %p231 = scmp.eq.s32.totalorder %s20, 1
      %p232 = scmp.ne.s32.totalorder %s227, %s229
      %p233 = scmp.eq.s32.totalorder %s20, 0
      %p234 = por %p232, %p233
      %p235 = scmp.ne.s32.totalorder %s227, %s229
      %p236 = scmp.eq.s32.totalorder %s25, 1
      %p237 = por %p235, %p236
      %p238 = scmp.ne.s32.totalorder %s229, %s230
      %p239 = scmp.eq.s32.totalorder %s25, 0
      %p240 = por %p238, %p239
      %p241 = scmp.ne.s32.totalorder %s229, %s230
      %p242 = scmp.eq.s32.totalorder %s26, 1
      %p243 = por %p241, %p242
      %p245 = scmp.ne.s32.totalorder %s230, %s244
      %p246 = scmp.eq.s32.totalorder %s26, 0
      %p247 = por %p245, %p246
      %s249 = sadd.s32 %s248, 1
      %p252 = scmp.eq.s32.totalorder %s20, 1
      %p253 = scmp.ne.s32.totalorder %s248, %s250
      %p254 = scmp.eq.s32.totalorder %s20, 0
      %p255 = por %p253, %p254
      %p256 = scmp.ne.s32.totalorder %s248, %s250
      %p257 = scmp.eq.s32.totalorder %s25, 1
      %p258 = por %p256, %p257
      %p259 = scmp.ne.s32.totalorder %s250, %s251
      %p260 = scmp.eq.s32.totalorder %s25, 0
      %p261 = por %p259, %p260
      %p262 = scmp.ne.s32.totalorder %s250, %s251
      %p263 = scmp.eq.s32.totalorder %s26, 1
      %p264 = por %p262, %p263
      %p266 = scmp.ne.s32.totalorder %s251, %s265
      %p267 = scmp.eq.s32.totalorder %s26, 0
      %p268 = por %p266, %p267
      %s269 = ssub.s32 %s20, %s27
      %p270 = scmp.eq.s32.totalorder %s269, 0
      %s272 = sadd.s32 %s271, 1
      %s273 = scalar_select %p270, %s271, %s272
      %p276 = pneg %p270
      %p277 = scmp.eq.s32.totalorder %s20, 1
      %p278 = por %p276, %p277
      %p279 = scmp.ne.s32.totalorder %s271, %s274
      %p280 = scmp.eq.s32.totalorder %s20, 0
      %p281 = por %p279, %p280
      %p282 = scmp.ne.s32.totalorder %s271, %s274
      %p283 = scmp.eq.s32.totalorder %s25, 1
      %p284 = por %p282, %p283
      %p285 = scmp.ne.s32.totalorder %s274, %s275
      %p286 = scmp.eq.s32.totalorder %s25, 0
      %p287 = por %p285, %p286
      %p288 = scmp.ne.s32.totalorder %s274, %s275
      %p289 = scmp.eq.s32.totalorder %s26, 1
      %p290 = por %p288, %p289
      %p292 = scmp.ne.s32.totalorder %s275, %s291
      %p293 = scmp.eq.s32.totalorder %s26, 0
      %p294 = por %p292, %p293
      %p295 = scmp.le.s32.totalorder 1, %s20
      %p296 = scmp.lt.s32.totalorder %s20, 3
      %p297 = pnand %p295, %p296
      %p298 = pneg %p297
      // Predicated region
      $region9: #{resblock_forward.1} parent=5 // pred_check
        _
      $region10: #{resblock_forward.1} parent=5 // pred_check_branch
        %300 = sbr.rel (%p297) target = $region12
      $region11: #{resblock_forward.1} parent=5 // pred_region
        %s301 = ssub.s32 %s20, 1
        // Predicated region
        $region13: #{resblock_forward.1} parent=11 // pred_check
          %p302 = pneg %p93
        $region14: #{resblock_forward.1} parent=11 // pred_check_branch
          %304 = sbr.rel (%p302) target = $region16
        $region15: #{resblock_forward.1} parent=11 // pred_region
          _
        $region16: #{resblock_forward.1} parent=11 // pred_fallthru
          _
        // Predicated region
        $region17: #{resblock_forward.1} parent=11 // pred_check
          %p305 = pneg %p114
        $region18: #{resblock_forward.1} parent=11 // pred_check_branch
          %307 = sbr.rel (%p305) target = $region20
        $region19: #{resblock_forward.1} parent=11 // pred_region
          _
        $region20: #{resblock_forward.1} parent=11 // pred_fallthru
          _
        // Predicated region
        $region21: #{resblock_forward.1} parent=11 // pred_check
          %p308 = pneg %p135
        $region22: #{resblock_forward.1} parent=11 // pred_check_branch
          %310 = sbr.rel (%p308) target = $region24
        $region23: #{resblock_forward.1} parent=11 // pred_region
          _
        $region24: #{resblock_forward.1} parent=11 // pred_fallthru
          _
        // Predicated region
        $region25: #{resblock_forward.1} parent=11 // pred_check
          %p311 = pneg %p156
        $region26: #{resblock_forward.1} parent=11 // pred_check_branch
          %313 = sbr.rel (%p311) target = $region28
        $region27: #{resblock_forward.1} parent=11 // pred_region
          _
        $region28: #{resblock_forward.1} parent=11 // pred_fallthru
          _
        // Predicated region
        $region29: #{resblock_forward.1} parent=11 // pred_check
          %p314 = pneg %p177
        $region30: #{resblock_forward.1} parent=11 // pred_check_branch
          %316 = sbr.rel (%p314) target = $region32
        $region31: #{resblock_forward.1} parent=11 // pred_region
          _
        $region32: #{resblock_forward.1} parent=11 // pred_fallthru
          _
        // Predicated region
        $region33: #{resblock_forward.1} parent=11 // pred_check
          %p317 = pneg %p198
        $region34: #{resblock_forward.1} parent=11 // pred_check_branch
          %319 = sbr.rel (%p317) target = $region36
        $region35: #{resblock_forward.1} parent=11 // pred_region
          _
        $region36: #{resblock_forward.1} parent=11 // pred_fallthru
          _
        // Predicated region
        $region37: #{resblock_forward.1} parent=11 // pred_check
          %p320 = pneg %p219
        $region38: #{resblock_forward.1} parent=11 // pred_check_branch
          %322 = sbr.rel (%p320) target = $region40
        $region39: #{resblock_forward.1} parent=11 // pred_region
          _
        $region40: #{resblock_forward.1} parent=11 // pred_fallthru
          _
        // Predicated region
        $region41: #{resblock_forward.1} parent=11 // pred_check
          %p323 = pneg %p240
        $region42: #{resblock_forward.1} parent=11 // pred_check_branch
          %325 = sbr.rel (%p323) target = $region44
        $region43: #{resblock_forward.1} parent=11 // pred_region
          _
        $region44: #{resblock_forward.1} parent=11 // pred_fallthru
          _
        // Predicated region
        $region45: #{resblock_forward.1} parent=11 // pred_check
          %p326 = pneg %p261
        $region46: #{resblock_forward.1} parent=11 // pred_check_branch
          %328 = sbr.rel (%p326) target = $region48
        $region47: #{resblock_forward.1} parent=11 // pred_region
          _
        $region48: #{resblock_forward.1} parent=11 // pred_fallthru
          _
      $region12: #{resblock_forward.1} parent=5 // pred_fallthru
        _
      %p329 = scmp.lt.s32.totalorder %s20, 2
      // Predicated region
      $region49: #{resblock_forward.1} parent=5 // pred_check
        %p330 = pneg %p329
      $region50: #{resblock_forward.1} parent=5 // pred_check_branch
        %332 = sbr.rel (%p330) target = $region52
      $region51: #{resblock_forward.1} parent=5 // pred_region
        // Predicated region
        $region53: #{resblock_forward.1} parent=51 // pred_check
          %p333 = pneg %p40
        $region54: #{resblock_forward.1} parent=51 // pred_check_branch
          %335 = sbr.rel (%p333) target = $region56
        $region55: #{resblock_forward.1} parent=51 // pred_region
          %p336 = scmp.lt.s32.totalorder %s20, 1
          %s337 = scalar_select %p336, %s20, 1
          %s338 = smul.addr %s337, 16
          %s339 = smul.addr %s338, 8
          %s340 = scalar_lea.vmem %s0, %s339
        $region56: #{resblock_forward.1} parent=51 // pred_fallthru
          _
        // Predicated region
        $region57: #{resblock_forward.1} parent=51 // pred_check
          %p341 = pneg %p66
        $region58: #{resblock_forward.1} parent=51 // pred_check_branch
          %343 = sbr.rel (%p341) target = $region60
        $region59: #{resblock_forward.1} parent=51 // pred_region
          %p344 = scmp.lt.s32.totalorder %s20, 1
          %s345 = scalar_select %p344, %s20, 1
          %s346 = smul.addr %s345, 8
          %s347 = smul.addr %s346, 8
          %s348 = scalar_lea.vmem %s1, %s347
        $region60: #{resblock_forward.1} parent=51 // pred_fallthru
          _
      $region52: #{resblock_forward.1} parent=5 // pred_fallthru
        _
      %p349 = scmp.le.s32.totalorder 1, %s20
      %p350 = scmp.lt.s32.totalorder %s20, 3
      %p351 = pnand %p349, %p350
      %p352 = pneg %p351
      // Predicated region
      $region61: #{resblock_forward.1} parent=5 // pred_check
        _
      $region62: #{resblock_forward.1} parent=5 // pred_check_branch
        %354 = sbr.rel (%p351) target = $region64
      $region63: #{resblock_forward.1} parent=5 // pred_region
        %s355 = ssub.s32 %s20, 1
        %p356 = scmp.lt.s32.totalorder %s25, 1
        %s357 = scalar_select %p356, %s25, 1
        %s358 = smul.addr %s357, 16
        %s359 = smul.addr %s358, 8
        %s360 = scalar_lea.vmem %s0, %s359
        %p361 = pneg %p46
        %p362 = pneg %p43
        %p363 = scmp.lt.s32.totalorder %s25, 1
        %s364 = scalar_select %p363, %s25, 1
        %s365 = smul.addr %s364, 8
        %s366 = smul.addr %s365, 8
        %s367 = scalar_lea.vmem %s1, %s366
        %p368 = pneg %p72
        %p369 = pneg %p69
        %p370 = pneg %p93
        %p371 = pneg %p90
        %p372 = pneg %p114
        %p373 = pneg %p111
        %p374 = pneg %p135
        %p375 = pneg %p132
        %p376 = pneg %p156
        %p377 = pneg %p153
        %p378 = pneg %p177
        %p379 = pneg %p174
        %p380 = pneg %p198
        %p381 = pneg %p195
        %p382 = pneg %p219
        %p383 = pneg %p216
        %p384 = pneg %p240
        %p385 = pneg %p237
        %p386 = pneg %p261
        %p387 = pneg %p258
        %p388 = pneg %p287
        %p389 = pneg %p284
        %s390 = sand.u32 %s274, 1
        %s391 = scalar_lea.sflag [#allocation4], %s390
        %s392 = sand.u32 %s274, 1
        %s393 = smul.addr %s392, 64
        %s394 = scalar_lea.vmem [#allocation3], %s393
        %p395 = scmp.lt.s32.totalorder %s25, 1
        %s396 = scalar_select %p395, %s25, 1
        %s397 = smul.addr %s396, 16
        %s398 = smul.addr %s397, 8
        %s399 = scalar_lea.vmem %s0, %s398
        %p400 = scmp.lt.s32.totalorder %s25, 1
        %s401 = scalar_select %p400, %s25, 1
        %s402 = smul.addr %s401, 8
        %s403 = smul.addr %s402, 8
        %s404 = scalar_lea.vmem %s1, %s403
        %v405 = vld [vmem:[%s399] sm:$0xff]
        %v406 = vld [vmem:[%s399 + $0x8] sm:$0xff]
        %v407 = vld [vmem:[%s399 + $0x10] sm:$0xff]
        %v408 = vld [vmem:[%s399 + $0x18] sm:$0xff]
        %v409 = vld [vmem:[%s399 + $0x20] sm:$0xff]
        %v410 = vld [vmem:[%s399 + $0x28] sm:$0xff]
        %v411 = vld [vmem:[%s399 + $0x30] sm:$0xff]
        %v412 = vld [vmem:[%s399 + $0x38] sm:$0xff]
        %v413 = vld [vmem:[%s399 + $0x40] sm:$0xff]
        %v414 = vld [vmem:[%s399 + $0x48] sm:$0xff]
        %v415 = vld [vmem:[%s399 + $0x50] sm:$0xff]
        %v416 = vld [vmem:[%s399 + $0x58] sm:$0xff]
        %v417 = vld [vmem:[%s399 + $0x60] sm:$0xff]
        %v418 = vld [vmem:[%s399 + $0x68] sm:$0xff]
        %v419 = vld [vmem:[%s399 + $0x70] sm:$0xff]
        %v420 = vld [vmem:[%s399 + $0x78] sm:$0xff]
        %v421 = vld [vmem:[%s2] sm:$0xff]
        %v422 = vld [vmem:[%s2 + $0x8] sm:$0xff]
        %v423 = vld [vmem:[%s2 + $0x10] sm:$0xff]
        %v424 = vld [vmem:[%s2 + $0x18] sm:$0xff]
        %v425 = vld [vmem:[%s2 + $0x20] sm:$0xff]
        %v426 = vld [vmem:[%s2 + $0x28] sm:$0xff]
        %v427 = vld [vmem:[%s2 + $0x30] sm:$0xff]
        %v428 = vld [vmem:[%s2 + $0x38] sm:$0xff]
        %v429 = vld [vmem:[%s2 + $0x40] sm:$0xff]
        %v430 = vld [vmem:[%s2 + $0x48] sm:$0xff]
        %v431 = vld [vmem:[%s2 + $0x50] sm:$0xff]
        %v432 = vld [vmem:[%s2 + $0x58] sm:$0xff]
        %v433 = vld [vmem:[%s2 + $0x60] sm:$0xff]
        %v434 = vld [vmem:[%s2 + $0x68] sm:$0xff]
        %v435 = vld [vmem:[%s2 + $0x70] sm:$0xff]
        %v436 = vld [vmem:[%s2 + $0x78] sm:$0xff]
        %v437 = vld [vmem:[%s2 + $0x80] sm:$0xff]
        %v438 = vld [vmem:[%s2 + $0x88] sm:$0xff]
        %vm439 = vcmask 130048
        %v441 = vsel %vm439, %v406, 0
        %v444 = vsel %vm439, %v408, 0
        %v447 = vsel %vm439, %v410, 0
        %v450 = vsel %vm439, %v412, 0
        %v453 = vsel %vm439, %v414, 0
        %v456 = vsel %vm439, %v416, 0
        %v459 = vsel %vm439, %v418, 0
        %v462 = vsel %vm439, %v420, 0
        %464 = vmatprep.subr.mxu0 0.0
        %465 = vmatpush1.msra.mxu0 %v436
        %466 = vmatprep.subr.mxu0 0.0
        %467 = vmatpush1.msra.mxu0 %v435
        %468 = vmatprep.subr.mxu0 0.0
        %469 = vmatpush1.msra.mxu0 %v434
        %470 = vmatprep.subr.mxu0 0.0
        %471 = vmatpush1.msra.mxu0 %v433
        %472 = vmatprep.subr.mxu0 0.0
        %473 = vmatpush1.msra.mxu0 %v432
        %474 = vmatprep.subr.mxu0 0.0
        %475 = vmatpush1.msra.mxu0 %v431
        %476 = vmatprep.subr.mxu0 0.0
        %477 = vmatpush1.msra.mxu0 %v430
        %478 = vmatprep.subr.mxu0 0.0
        %479 = vmatpush1.msra.mxu0 %v429
        %480 = vmatprep.subr.mxu0 0.0
        %481 = vmatpush1.msra.mxu0 %v428
        %482 = vmatprep.subr.mxu0 0.0
        %483 = vmatpush1.msra.mxu0 %v427
        %484 = vmatprep.subr.mxu0 0.0
        %485 = vmatpush1.msra.mxu0 %v426
        %486 = vmatprep.subr.mxu0 0.0
        %487 = vmatpush1.msra.mxu0 %v425
        %488 = vmatprep.subr.mxu0 0.0
        %489 = vmatpush1.msra.mxu0 %v424
        %490 = vmatprep.subr.mxu0 0.0
        %491 = vmatpush1.msra.mxu0 %v423
        %492 = vmatprep.subr.mxu0 0.0
        %493 = vmatpush1.msra.mxu0 %v422
        %494 = vmatprep.subr.mxu0 0.0
        %495 = vmatpush1.msra.mxu0 %v421
        %496 = vmatprep.subr.mxu0 0.0
        %497 = vmatpush2.msra.mxu0 0.0
        %498 = vmatprep.subr.mxu0 0.0
        %499 = vmatpush2.msra.mxu0 0.0
        %500 = vmatprep.subr.mxu0 0.0
        %501 = vmatpush2.msra.mxu0 0.0
        %502 = vmatprep.subr.mxu0 0.0
        %503 = vmatpush2.msra.mxu0 0.0
        %504 = vmatprep.subr.mxu0 0.0
        %505 = vmatpush2.msra.mxu0 0.0
        %506 = vmatprep.subr.mxu0 0.0
        %507 = vmatpush2.msra.mxu0 0.0
        %508 = vmatprep.subr.mxu0 0.0
        %509 = vmatpush2.msra.mxu0 0.0
        %510 = vmatprep.subr.mxu0 0.0
        %511 = vmatpush2.msra.mxu0 0.0
        %512 = vmatprep.subr.mxu0 0.0
        %513 = vmatpush2.msra.mxu0 0.0
        %514 = vmatprep.subr.mxu0 0.0
        %515 = vmatpush2.msra.mxu0 0.0
        %516 = vmatprep.subr.mxu0 0.0
        %517 = vmatpush2.msra.mxu0 0.0
        %518 = vmatprep.subr.mxu0 0.0
        %519 = vmatpush2.msra.mxu0 0.0
        %520 = vmatprep.subr.mxu0 0.0
        %521 = vmatpush2.msra.mxu0 0.0
        %522 = vmatprep.subr.mxu0 0.0
        %523 = vmatpush2.msra.mxu0 0.0
        %524 = vmatprep.subr.mxu0 0.0
        %525 = vmatpush2.msra.mxu0 %v438
        %526 = vmatprep.subr.mxu0 0.0
        %527 = vmatpush2.msra.mxu0 %v437
        %528 = vmatprep.mubr.f32.mxu0 %v441
        %529 = vmatmul.mubr.f32.gmra.mxu0 %v405
        %v530 = vpop.f32.mrf.mxu0
        %v531 = vadd.f32 0.0, %v530
        %v532 = vpop.f32.mrf.mxu0
        %533 = vmatprep.mubr.f32.mxu0 %v444
        %534 = vmatmul.mubr.f32.gmra.mxu0 %v407
        %v535 = vpop.f32.mrf.mxu0
        %v536 = vadd.f32 0.0, %v535
        %v537 = vpop.f32.mrf.mxu0
        %538 = vmatprep.mubr.f32.mxu0 %v447
        %539 = vmatmul.mubr.f32.gmra.mxu0 %v409
        %v540 = vpop.f32.mrf.mxu0
        %v541 = vadd.f32 0.0, %v540
        %v542 = vpop.f32.mrf.mxu0
        %543 = vmatprep.mubr.f32.mxu0 %v450
        %544 = vmatmul.mubr.f32.gmra.mxu0 %v411
        %v545 = vpop.f32.mrf.mxu0
        %v546 = vadd.f32 0.0, %v545
        %v547 = vpop.f32.mrf.mxu0
        %548 = vmatprep.mubr.f32.mxu0 %v453
        %549 = vmatmul.mubr.f32.gmra.mxu0 %v413
        %v550 = vpop.f32.mrf.mxu0
        %v551 = vadd.f32 0.0, %v550
        %v552 = vpop.f32.mrf.mxu0
        %553 = vmatprep.mubr.f32.mxu0 %v456
        %554 = vmatmul.mubr.f32.gmra.mxu0 %v415
        %v555 = vpop.f32.mrf.mxu0
        %v556 = vadd.f32 0.0, %v555
        %v557 = vpop.f32.mrf.mxu0
        %558 = vmatprep.mubr.f32.mxu0 %v459
        %559 = vmatmul.mubr.f32.gmra.mxu0 %v417
        %v560 = vpop.f32.mrf.mxu0
        %v561 = vadd.f32 0.0, %v560
        %v562 = vpop.f32.mrf.mxu0
        %563 = vmatprep.mubr.f32.mxu0 %v462
        %564 = vmatmul.mubr.f32.gmra.mxu0 %v419
        %v565 = vpop.f32.mrf.mxu0
        %v566 = vadd.f32 0.0, %v565
        %v567 = vpop.f32.mrf.mxu0
        %568 = vdwg.mxu0
        %v569 = vld [vmem:[%s3] sm:$0x1]
        %v571 = vlaneseq
        %v572 = vshrl.u32 %v571, 7
        %v573 = vsub.s32 0, %v572
        %v574 = vrot.slane %v569, %v573
        %v576 = vmul.f32 %v531, %v574
        %v577 = vmul.f32 %v536, %v574
        %v578 = vmul.f32 %v541, %v574
        %v579 = vmul.f32 %v546, %v574
        %v580 = vmul.f32 %v551, %v574
        %v581 = vmul.f32 %v556, %v574
        %v582 = vmul.f32 %v561, %v574
        %v583 = vmul.f32 %v566, %v574
        %v584 = vld [vmem:[%s4] sm:$0x1]
        %v586 = vlaneseq
        %v587 = vshrl.u32 %v586, 7
        %v588 = vsub.s32 0, %v587
        %v589 = vrot.slane %v584, %v588
        %v591 = vadd.f32 %v576, %v589
        %v592 = vadd.f32 %v577, %v589
        %v593 = vadd.f32 %v578, %v589
        %v594 = vadd.f32 %v579, %v589
        %v595 = vadd.f32 %v580, %v589
        %v596 = vadd.f32 %v581, %v589
        %v597 = vadd.f32 %v582, %v589
        %v598 = vadd.f32 %v583, %v589
        %v599 = vmax.f32 %v591, 0.0
        %v600 = vmax.f32 %v592, 0.0
        %v601 = vmax.f32 %v593, 0.0
        %v602 = vmax.f32 %v594, 0.0
        %v603 = vmax.f32 %v595, 0.0
        %v604 = vmax.f32 %v596, 0.0
        %v605 = vmax.f32 %v597, 0.0
        %v606 = vmax.f32 %v598, 0.0
        %v607 = vld [vmem:[%s404] sm:$0xff]
        %v608 = vld [vmem:[%s404 + $0x8] sm:$0xff]
        %v609 = vld [vmem:[%s404 + $0x10] sm:$0xff]
        %v610 = vld [vmem:[%s404 + $0x18] sm:$0xff]
        %v611 = vld [vmem:[%s404 + $0x20] sm:$0xff]
        %v612 = vld [vmem:[%s404 + $0x28] sm:$0xff]
        %v613 = vld [vmem:[%s404 + $0x30] sm:$0xff]
        %v614 = vld [vmem:[%s404 + $0x38] sm:$0xff]
        %v615 = vld [vmem:[%s5] sm:$0xff]
        %v616 = vld [vmem:[%s5 + $0x8] sm:$0xff]
        %v618 = vsel %vm439, %v607, 0
        %v621 = vsel %vm439, %v608, 0
        %v624 = vsel %vm439, %v609, 0
        %v627 = vsel %vm439, %v610, 0
        %v630 = vsel %vm439, %v611, 0
        %v633 = vsel %vm439, %v612, 0
        %v636 = vsel %vm439, %v613, 0
        %v639 = vsel %vm439, %v614, 0
        %641 = vmatprep.subr.mxu0 0.0
        %642 = vmatpush1.msra.mxu0 0.0
        %643 = vmatprep.subr.mxu0 0.0
        %644 = vmatpush1.msra.mxu0 0.0
        %645 = vmatprep.subr.mxu0 0.0
        %646 = vmatpush1.msra.mxu0 0.0
        %647 = vmatprep.subr.mxu0 0.0
        %648 = vmatpush1.msra.mxu0 0.0
        %649 = vmatprep.subr.mxu0 0.0
        %650 = vmatpush1.msra.mxu0 0.0
        %651 = vmatprep.subr.mxu0 0.0
        %652 = vmatpush1.msra.mxu0 0.0
        %653 = vmatprep.subr.mxu0 0.0
        %654 = vmatpush1.msra.mxu0 0.0
        %655 = vmatprep.subr.mxu0 0.0
        %656 = vmatpush1.msra.mxu0 0.0
        %657 = vmatprep.subr.mxu0 0.0
        %658 = vmatpush1.msra.mxu0 0.0
        %659 = vmatprep.subr.mxu0 0.0
        %660 = vmatpush1.msra.mxu0 0.0
        %661 = vmatprep.subr.mxu0 0.0
        %662 = vmatpush1.msra.mxu0 0.0
        %663 = vmatprep.subr.mxu0 0.0
        %664 = vmatpush1.msra.mxu0 0.0
        %665 = vmatprep.subr.mxu0 0.0
        %666 = vmatpush1.msra.mxu0 0.0
        %667 = vmatprep.subr.mxu0 0.0
        %668 = vmatpush1.msra.mxu0 0.0
        %669 = vmatprep.subr.mxu0 0.0
        %670 = vmatpush1.msra.mxu0 %v616
        %671 = vmatprep.subr.mxu0 0.0
        %672 = vmatpush1.msra.mxu0 %v615
        %673 = vmatprep.subr.mxu0 0.0
        %674 = vmatpush2.msra.mxu0 0.0
        %675 = vmatprep.subr.mxu0 0.0
        %676 = vmatpush2.msra.mxu0 0.0
        %677 = vmatprep.subr.mxu0 0.0
        %678 = vmatpush2.msra.mxu0 0.0
        %679 = vmatprep.subr.mxu0 0.0
        %680 = vmatpush2.msra.mxu0 0.0
        %681 = vmatprep.subr.mxu0 0.0
        %682 = vmatpush2.msra.mxu0 0.0
        %683 = vmatprep.subr.mxu0 0.0
        %684 = vmatpush2.msra.mxu0 0.0
        %685 = vmatprep.subr.mxu0 0.0
        %686 = vmatpush2.msra.mxu0 0.0
        %687 = vmatprep.subr.mxu0 0.0
        %688 = vmatpush2.msra.mxu0 0.0
        %689 = vmatprep.subr.mxu0 0.0
        %690 = vmatpush2.msra.mxu0 0.0
        %691 = vmatprep.subr.mxu0 0.0
        %692 = vmatpush2.msra.mxu0 0.0
        %693 = vmatprep.subr.mxu0 0.0
        %694 = vmatpush2.msra.mxu0 0.0
        %695 = vmatprep.subr.mxu0 0.0
        %696 = vmatpush2.msra.mxu0 0.0
        %697 = vmatprep.subr.mxu0 0.0
        %698 = vmatpush2.msra.mxu0 0.0
        %699 = vmatprep.subr.mxu0 0.0
        %700 = vmatpush2.msra.mxu0 0.0
        %701 = vmatprep.subr.mxu0 0.0
        %702 = vmatpush2.msra.mxu0 0.0
        %703 = vmatprep.subr.mxu0 0.0
        %704 = vmatpush2.msra.mxu0 0.0
        %705 = vmatprep.mubr.f32.mxu0 0.0
        %706 = vmatmul.mubr.f32.gmra.mxu0 %v618
        %v707 = vpop.f32.mrf.mxu0
        %v708 = vadd.f32 0.0, %v707
        %v709 = vpop.f32.mrf.mxu0
        %710 = vmatprep.mubr.f32.mxu0 0.0
        %711 = vmatmul.mubr.f32.gmra.mxu0 %v621
        %v712 = vpop.f32.mrf.mxu0
        %v713 = vadd.f32 0.0, %v712
        %v714 = vpop.f32.mrf.mxu0
        %715 = vmatprep.mubr.f32.mxu0 0.0
        %716 = vmatmul.mubr.f32.gmra.mxu0 %v624
        %v717 = vpop.f32.mrf.mxu0
        %v718 = vadd.f32 0.0, %v717
        %v719 = vpop.f32.mrf.mxu0
        %720 = vmatprep.mubr.f32.mxu0 0.0
        %721 = vmatmul.mubr.f32.gmra.mxu0 %v627
        %v722 = vpop.f32.mrf.mxu0
        %v723 = vadd.f32 0.0, %v722
        %v724 = vpop.f32.mrf.mxu0
        %725 = vmatprep.mubr.f32.mxu0 0.0
        %726 = vmatmul.mubr.f32.gmra.mxu0 %v630
        %v727 = vpop.f32.mrf.mxu0
        %v728 = vadd.f32 0.0, %v727
        %v729 = vpop.f32.mrf.mxu0
        %730 = vmatprep.mubr.f32.mxu0 0.0
        %731 = vmatmul.mubr.f32.gmra.mxu0 %v633
        %v732 = vpop.f32.mrf.mxu0
        %v733 = vadd.f32 0.0, %v732
        %v734 = vpop.f32.mrf.mxu0
        %735 = vmatprep.mubr.f32.mxu0 0.0
        %736 = vmatmul.mubr.f32.gmra.mxu0 %v636
        %v737 = vpop.f32.mrf.mxu0
        %v738 = vadd.f32 0.0, %v737
        %v739 = vpop.f32.mrf.mxu0
        %740 = vmatprep.mubr.f32.mxu0 0.0
        %741 = vmatmul.mubr.f32.gmra.mxu0 %v639
        %v742 = vpop.f32.mrf.mxu0
        %v743 = vadd.f32 0.0, %v742
        %v744 = vpop.f32.mrf.mxu0
        %745 = vdwg.mxu0
        %v746 = vld [vmem:[%s6] sm:$0x1]
        %v748 = vlaneseq
        %v749 = vshrl.u32 %v748, 7
        %v750 = vsub.s32 0, %v749
        %v751 = vrot.slane %v746, %v750
        %v753 = vmul.f32 %v708, %v751
        %v754 = vmul.f32 %v713, %v751
        %v755 = vmul.f32 %v718, %v751
        %v756 = vmul.f32 %v723, %v751
        %v757 = vmul.f32 %v728, %v751
        %v758 = vmul.f32 %v733, %v751
        %v759 = vmul.f32 %v738, %v751
        %v760 = vmul.f32 %v743, %v751
        %v761 = vld [vmem:[%s7] sm:$0x1]
        %v763 = vlaneseq
        %v764 = vshrl.u32 %v763, 7
        %v765 = vsub.s32 0, %v764
        %v766 = vrot.slane %v761, %v765
        %v768 = vadd.f32 %v753, %v766
        %v769 = vadd.f32 %v754, %v766
        %v770 = vadd.f32 %v755, %v766
        %v771 = vadd.f32 %v756, %v766
        %v772 = vadd.f32 %v757, %v766
        %v773 = vadd.f32 %v758, %v766
        %v774 = vadd.f32 %v759, %v766
        %v775 = vadd.f32 %v760, %v766
        %vm776 = vcmask 261120
        %777 = vst.msk [vmem:[#allocation2] sm:$0xff] %vm776, 0.0
        %vm778 = vcmask 254976
        %779 = vst.msk [vmem:[#allocation2 + $0x8] sm:$0x3] %vm778, 0.0
        %780 = vst.msk [vmem:[#allocation2 + $0x10] sm:$0xff] %vm776, 0.0
        %781 = vst.msk [vmem:[#allocation2 + $0x18] sm:$0x3] %vm778, 0.0
        %782 = vst.msk [vmem:[#allocation2 + $0x20] sm:$0xff] %vm776, 0.0
        %783 = vst.msk [vmem:[#allocation2 + $0x28] sm:$0x3] %vm778, 0.0
        %784 = vst.msk [vmem:[#allocation2 + $0x30] sm:$0xff] %vm776, 0.0
        %785 = vst.msk [vmem:[#allocation2 + $0x38] sm:$0x3] %vm778, 0.0
        %786 = vst.msk [vmem:[#allocation2 + $0x40] sm:$0xff] %vm776, 0.0
        %787 = vst.msk [vmem:[#allocation2 + $0x48] sm:$0x3] %vm778, 0.0
        %788 = vst.msk [vmem:[#allocation2 + $0x50] sm:$0xff] %vm776, 0.0
        %789 = vst.msk [vmem:[#allocation2 + $0x58] sm:$0x3] %vm778, 0.0
        %790 = vst.msk [vmem:[#allocation2 + $0x60] sm:$0xff] %vm776, 0.0
        %791 = vst.msk [vmem:[#allocation2 + $0x68] sm:$0x3] %vm778, 0.0
        %792 = vst.msk [vmem:[#allocation2 + $0x70] sm:$0xff] %vm776, 0.0
        %793 = vst.msk [vmem:[#allocation2 + $0x78] sm:$0x3] %vm778, 0.0
        %794 = vst.msk [vmem:[#allocation2 + $0x80] sm:$0xff] %vm776, 0.0
        %795 = vst.msk [vmem:[#allocation2 + $0x88] sm:$0x3] %vm778, 0.0
        %796 = vst.msk [vmem:[#allocation2 + $0x90] sm:$0xff] %vm776, 0.0
        %797 = vst.msk [vmem:[#allocation2 + $0x98] sm:$0x3] %vm778, 0.0
        %s798 = scalar_lea.vmem [#allocation2], 16
        %799 = vst.msk [vmem:[%s798 + $0x1] sm:$0xff] %vm776, %v599
        %800 = vst.msk [vmem:[%s798 + $0x11] sm:$0xff] %vm776, %v600
        %801 = vst.msk [vmem:[%s798 + $0x21] sm:$0xff] %vm776, %v601
        %802 = vst.msk [vmem:[%s798 + $0x31] sm:$0xff] %vm776, %v602
        %803 = vst.msk [vmem:[%s798 + $0x41] sm:$0xff] %vm776, %v603
        %804 = vst.msk [vmem:[%s798 + $0x51] sm:$0xff] %vm776, %v604
        %805 = vst.msk [vmem:[%s798 + $0x61] sm:$0xff] %vm776, %v605
        %806 = vst.msk [vmem:[%s798 + $0x71] sm:$0xff] %vm776, %v606
        %v807 = vld [vmem:[#allocation2] sm:$0xff]
        %v808 = vld [vmem:[#allocation2 + $0x10] sm:$0xff]
        %v809 = vld [vmem:[#allocation2 + $0x20] sm:$0xff]
        %v810 = vld [vmem:[#allocation2 + $0x30] sm:$0xff]
        %v811 = vld [vmem:[#allocation2 + $0x40] sm:$0xff]
        %v812 = vld [vmem:[#allocation2 + $0x50] sm:$0xff]
        %v813 = vld [vmem:[#allocation2 + $0x60] sm:$0xff]
        %v814 = vld [vmem:[#allocation2 + $0x70] sm:$0xff]
        %v815 = vld [vmem:[%s8] sm:$0xff]
        %v816 = vld [vmem:[%s8 + $0x8] sm:$0xff]
        %v817 = vld [vmem:[%s8 + $0x10] sm:$0xff]
        %v818 = vld [vmem:[%s8 + $0x18] sm:$0xff]
        %v819 = vld [vmem:[#allocation2 + $0x1] sm:$0xff]
        %v820 = vld [vmem:[#allocation2 + $0x11] sm:$0xff]
        %v821 = vld [vmem:[#allocation2 + $0x21] sm:$0xff]
        %v822 = vld [vmem:[#allocation2 + $0x31] sm:$0xff]
        %v823 = vld [vmem:[#allocation2 + $0x41] sm:$0xff]
        %v824 = vld [vmem:[#allocation2 + $0x51] sm:$0xff]
        %v825 = vld [vmem:[#allocation2 + $0x61] sm:$0xff]
        %v826 = vld [vmem:[#allocation2 + $0x71] sm:$0xff]
        %s827 = scalar_lea.vmem %s8, 32
        %v828 = vld [vmem:[%s827] sm:$0xff]
        %v829 = vld [vmem:[%s827 + $0x8] sm:$0xff]
        %v830 = vld [vmem:[%s827 + $0x10] sm:$0xff]
        %v831 = vld [vmem:[%s827 + $0x18] sm:$0xff]
        %v833 = vsel %vm776, %v819, 0
        %v836 = vsel %vm776, %v820, 0
        %v839 = vsel %vm776, %v821, 0
        %v842 = vsel %vm776, %v822, 0
        %v845 = vsel %vm776, %v823, 0
        %v848 = vsel %vm776, %v824, 0
        %v851 = vsel %vm776, %v825, 0
        %v854 = vsel %vm776, %v826, 0
        %856 = vmatprep.subr.mxu0 0.0
        %857 = vmatpush1.msra.mxu0 0.0
        %858 = vmatprep.subr.mxu0 0.0
        %859 = vmatpush1.msra.mxu0 0.0
        %860 = vmatprep.subr.mxu0 0.0
        %861 = vmatpush1.msra.mxu0 0.0
        %862 = vmatprep.subr.mxu0 0.0
        %863 = vmatpush1.msra.mxu0 0.0
        %864 = vmatprep.subr.mxu0 0.0
        %865 = vmatpush1.msra.mxu0 0.0
        %866 = vmatprep.subr.mxu0 0.0
        %867 = vmatpush1.msra.mxu0 0.0
        %868 = vmatprep.subr.mxu0 0.0
        %869 = vmatpush1.msra.mxu0 0.0
        %870 = vmatprep.subr.mxu0 0.0
        %871 = vmatpush1.msra.mxu0 0.0
        %872 = vmatprep.subr.mxu0 0.0
        %873 = vmatpush1.msra.mxu0 0.0
        %874 = vmatprep.subr.mxu0 0.0
        %875 = vmatpush1.msra.mxu0 0.0
        %876 = vmatprep.subr.mxu0 0.0
        %877 = vmatpush1.msra.mxu0 0.0
        %878 = vmatprep.subr.mxu0 0.0
        %879 = vmatpush1.msra.mxu0 0.0
        %880 = vmatprep.subr.mxu0 0.0
        %881 = vmatpush1.msra.mxu0 %v831
        %882 = vmatprep.subr.mxu0 0.0
        %883 = vmatpush1.msra.mxu0 %v830
        %884 = vmatprep.subr.mxu0 0.0
        %885 = vmatpush1.msra.mxu0 %v829
        %886 = vmatprep.subr.mxu0 0.0
        %887 = vmatpush1.msra.mxu0 %v828
        %888 = vmatprep.subr.mxu0 0.0
        %889 = vmatpush2.msra.mxu0 0.0
        %890 = vmatprep.subr.mxu0 0.0
        %891 = vmatpush2.msra.mxu0 0.0
        %892 = vmatprep.subr.mxu0 0.0
        %893 = vmatpush2.msra.mxu0 0.0
        %894 = vmatprep.subr.mxu0 0.0
        %895 = vmatpush2.msra.mxu0 0.0
        %896 = vmatprep.subr.mxu0 0.0
        %897 = vmatpush2.msra.mxu0 0.0
        %898 = vmatprep.subr.mxu0 0.0
        %899 = vmatpush2.msra.mxu0 0.0
        %900 = vmatprep.subr.mxu0 0.0
        %901 = vmatpush2.msra.mxu0 0.0
        %902 = vmatprep.subr.mxu0 0.0
        %903 = vmatpush2.msra.mxu0 0.0
        %904 = vmatprep.subr.mxu0 0.0
        %905 = vmatpush2.msra.mxu0 0.0
        %906 = vmatprep.subr.mxu0 0.0
        %907 = vmatpush2.msra.mxu0 0.0
        %908 = vmatprep.subr.mxu0 0.0
        %909 = vmatpush2.msra.mxu0 0.0
        %910 = vmatprep.subr.mxu0 0.0
        %911 = vmatpush2.msra.mxu0 0.0
        %912 = vmatprep.subr.mxu0 0.0
        %913 = vmatpush2.msra.mxu0 0.0
        %914 = vmatprep.subr.mxu0 0.0
        %915 = vmatpush2.msra.mxu0 0.0
        %916 = vmatprep.subr.mxu0 0.0
        %917 = vmatpush2.msra.mxu0 0.0
        %918 = vmatprep.subr.mxu0 0.0
        %919 = vmatpush2.msra.mxu0 0.0
        %920 = vmatprep.mubr.f32.mxu0 0.0
        %921 = vmatmul.mubr.f32.gmra.mxu0 %v833
        %v922 = vpop.f32.mrf.mxu0
        %v923 = vadd.f32 0.0, %v922
        %v924 = vpop.f32.mrf.mxu0
        %925 = vmatprep.mubr.f32.mxu0 0.0
        %926 = vmatmul.mubr.f32.gmra.mxu0 %v836
        %v927 = vpop.f32.mrf.mxu0
        %v928 = vadd.f32 0.0, %v927
        %v929 = vpop.f32.mrf.mxu0
        %930 = vmatprep.mubr.f32.mxu0 0.0
        %931 = vmatmul.mubr.f32.gmra.mxu0 %v839
        %v932 = vpop.f32.mrf.mxu0
        %v933 = vadd.f32 0.0, %v932
        %v934 = vpop.f32.mrf.mxu0
        %935 = vmatprep.mubr.f32.mxu0 0.0
        %936 = vmatmul.mubr.f32.gmra.mxu0 %v842
        %v937 = vpop.f32.mrf.mxu0
        %v938 = vadd.f32 0.0, %v937
        %v939 = vpop.f32.mrf.mxu0
        %940 = vmatprep.mubr.f32.mxu0 0.0
        %941 = vmatmul.mubr.f32.gmra.mxu0 %v845
        %v942 = vpop.f32.mrf.mxu0
        %v943 = vadd.f32 0.0, %v942
        %v944 = vpop.f32.mrf.mxu0
        %945 = vmatprep.mubr.f32.mxu0 0.0
        %946 = vmatmul.mubr.f32.gmra.mxu0 %v848
        %v947 = vpop.f32.mrf.mxu0
        %v948 = vadd.f32 0.0, %v947
        %v949 = vpop.f32.mrf.mxu0
        %950 = vmatprep.mubr.f32.mxu0 0.0
        %951 = vmatmul.mubr.f32.gmra.mxu0 %v851
        %v952 = vpop.f32.mrf.mxu0
        %v953 = vadd.f32 0.0, %v952
        %v954 = vpop.f32.mrf.mxu0
        %955 = vmatprep.mubr.f32.mxu0 0.0
        %956 = vmatmul.mubr.f32.gmra.mxu0 %v854
        %v957 = vpop.f32.mrf.mxu0
        %v958 = vadd.f32 0.0, %v957
        %v959 = vpop.f32.mrf.mxu0
        %960 = vdwg.mxu0
        %v962 = vsel %vm776, %v807, 0
        %v965 = vsel %vm776, %v808, 0
        %v968 = vsel %vm776, %v809, 0
        %v971 = vsel %vm776, %v810, 0
        %v974 = vsel %vm776, %v811, 0
        %v977 = vsel %vm776, %v812, 0
        %v980 = vsel %vm776, %v813, 0
        %v983 = vsel %vm776, %v814, 0
        %985 = vmatprep.subr.mxu0 0.0
        %986 = vmatpush1.msra.mxu0 0.0
        %987 = vmatprep.subr.mxu0 0.0
        %988 = vmatpush1.msra.mxu0 0.0
        %989 = vmatprep.subr.mxu0 0.0
        %990 = vmatpush1.msra.mxu0 0.0
        %991 = vmatprep.subr.mxu0 0.0
        %992 = vmatpush1.msra.mxu0 0.0
        %993 = vmatprep.subr.mxu0 0.0
        %994 = vmatpush1.msra.mxu0 0.0
        %995 = vmatprep.subr.mxu0 0.0
        %996 = vmatpush1.msra.mxu0 0.0
        %997 = vmatprep.subr.mxu0 0.0
        %998 = vmatpush1.msra.mxu0 0.0
        %999 = vmatprep.subr.mxu0 0.0
        %1000 = vmatpush1.msra.mxu0 0.0
        %1001 = vmatprep.subr.mxu0 0.0
        %1002 = vmatpush1.msra.mxu0 0.0
        %1003 = vmatprep.subr.mxu0 0.0
        %1004 = vmatpush1.msra.mxu0 0.0
        %1005 = vmatprep.subr.mxu0 0.0
        %1006 = vmatpush1.msra.mxu0 0.0
        %1007 = vmatprep.subr.mxu0 0.0
        %1008 = vmatpush1.msra.mxu0 0.0
        %1009 = vmatprep.subr.mxu0 0.0
        %1010 = vmatpush1.msra.mxu0 %v818
        %1011 = vmatprep.subr.mxu0 0.0
        %1012 = vmatpush1.msra.mxu0 %v817
        %1013 = vmatprep.subr.mxu0 0.0
        %1014 = vmatpush1.msra.mxu0 %v816
        %1015 = vmatprep.subr.mxu0 0.0
        %1016 = vmatpush1.msra.mxu0 %v815
        %1017 = vmatprep.subr.mxu0 0.0
        %1018 = vmatpush2.msra.mxu0 0.0
        %1019 = vmatprep.subr.mxu0 0.0
        %1020 = vmatpush2.msra.mxu0 0.0
        %1021 = vmatprep.subr.mxu0 0.0
        %1022 = vmatpush2.msra.mxu0 0.0
        %1023 = vmatprep.subr.mxu0 0.0
        %1024 = vmatpush2.msra.mxu0 0.0
        %1025 = vmatprep.subr.mxu0 0.0
        %1026 = vmatpush2.msra.mxu0 0.0
        %1027 = vmatprep.subr.mxu0 0.0
        %1028 = vmatpush2.msra.mxu0 0.0
        %1029 = vmatprep.subr.mxu0 0.0
        %1030 = vmatpush2.msra.mxu0 0.0
        %1031 = vmatprep.subr.mxu0 0.0
        %1032 = vmatpush2.msra.mxu0 0.0
        %1033 = vmatprep.subr.mxu0 0.0
        %1034 = vmatpush2.msra.mxu0 0.0
        %1035 = vmatprep.subr.mxu0 0.0
        %1036 = vmatpush2.msra.mxu0 0.0
        %1037 = vmatprep.subr.mxu0 0.0
        %1038 = vmatpush2.msra.mxu0 0.0
        %1039 = vmatprep.subr.mxu0 0.0
        %1040 = vmatpush2.msra.mxu0 0.0
        %1041 = vmatprep.subr.mxu0 0.0
        %1042 = vmatpush2.msra.mxu0 0.0
        %1043 = vmatprep.subr.mxu0 0.0
        %1044 = vmatpush2.msra.mxu0 0.0
        %1045 = vmatprep.subr.mxu0 0.0
        %1046 = vmatpush2.msra.mxu0 0.0
        %1047 = vmatprep.subr.mxu0 0.0
        %1048 = vmatpush2.msra.mxu0 0.0
        %1049 = vmatprep.mubr.f32.mxu0 0.0
        %1050 = vmatmul.mubr.f32.gmra.mxu0 %v962
        %v1051 = vpop.f32.mrf.mxu0
        %v1052 = vadd.f32 %v923, %v1051
        %v1053 = vpop.f32.mrf.mxu0
        %1054 = vmatprep.mubr.f32.mxu0 0.0
        %1055 = vmatmul.mubr.f32.gmra.mxu0 %v965
        %v1056 = vpop.f32.mrf.mxu0
        %v1057 = vadd.f32 %v928, %v1056
        %v1058 = vpop.f32.mrf.mxu0
        %1059 = vmatprep.mubr.f32.mxu0 0.0
        %1060 = vmatmul.mubr.f32.gmra.mxu0 %v968
        %v1061 = vpop.f32.mrf.mxu0
        %v1062 = vadd.f32 %v933, %v1061
        %v1063 = vpop.f32.mrf.mxu0
        %1064 = vmatprep.mubr.f32.mxu0 0.0
        %1065 = vmatmul.mubr.f32.gmra.mxu0 %v971
        %v1066 = vpop.f32.mrf.mxu0
        %v1067 = vadd.f32 %v938, %v1066
        %v1068 = vpop.f32.mrf.mxu0
        %1069 = vmatprep.mubr.f32.mxu0 0.0
        %1070 = vmatmul.mubr.f32.gmra.mxu0 %v974
        %v1071 = vpop.f32.mrf.mxu0
        %v1072 = vadd.f32 %v943, %v1071
        %v1073 = vpop.f32.mrf.mxu0
        %1074 = vmatprep.mubr.f32.mxu0 0.0
        %1075 = vmatmul.mubr.f32.gmra.mxu0 %v977
        %v1076 = vpop.f32.mrf.mxu0
        %v1077 = vadd.f32 %v948, %v1076
        %v1078 = vpop.f32.mrf.mxu0
        %1079 = vmatprep.mubr.f32.mxu0 0.0
        %1080 = vmatmul.mubr.f32.gmra.mxu0 %v980
        %v1081 = vpop.f32.mrf.mxu0
        %v1082 = vadd.f32 %v953, %v1081
        %v1083 = vpop.f32.mrf.mxu0
        %1084 = vmatprep.mubr.f32.mxu0 0.0
        %1085 = vmatmul.mubr.f32.gmra.mxu0 %v983
        %v1086 = vpop.f32.mrf.mxu0
        %v1087 = vadd.f32 %v958, %v1086
        %v1088 = vpop.f32.mrf.mxu0
        %1089 = vdwg.mxu0
        %v1090 = vld [vmem:[#allocation2 + $0x2] sm:$0xff]
        %v1091 = vld [vmem:[#allocation2 + $0x12] sm:$0xff]
        %v1092 = vld [vmem:[#allocation2 + $0x22] sm:$0xff]
        %v1093 = vld [vmem:[#allocation2 + $0x32] sm:$0xff]
        %v1094 = vld [vmem:[#allocation2 + $0x42] sm:$0xff]
        %v1095 = vld [vmem:[#allocation2 + $0x52] sm:$0xff]
        %v1096 = vld [vmem:[#allocation2 + $0x62] sm:$0xff]
        %v1097 = vld [vmem:[#allocation2 + $0x72] sm:$0xff]
        %s1098 = scalar_lea.vmem %s8, 64
        %v1099 = vld [vmem:[%s1098] sm:$0xff]
        %v1100 = vld [vmem:[%s1098 + $0x8] sm:$0xff]
        %v1101 = vld [vmem:[%s1098 + $0x10] sm:$0xff]
        %v1102 = vld [vmem:[%s1098 + $0x18] sm:$0xff]
        %v1104 = vsel %vm776, %v1090, 0
        %v1107 = vsel %vm776, %v1091, 0
        %v1110 = vsel %vm776, %v1092, 0
        %v1113 = vsel %vm776, %v1093, 0
        %v1116 = vsel %vm776, %v1094, 0
        %v1119 = vsel %vm776, %v1095, 0
        %v1122 = vsel %vm776, %v1096, 0
        %v1125 = vsel %vm776, %v1097, 0
        %1127 = vmatprep.subr.mxu0 0.0
        %1128 = vmatpush1.msra.mxu0 0.0
        %1129 = vmatprep.subr.mxu0 0.0
        %1130 = vmatpush1.msra.mxu0 0.0
        %1131 = vmatprep.subr.mxu0 0.0
        %1132 = vmatpush1.msra.mxu0 0.0
        %1133 = vmatprep.subr.mxu0 0.0
        %1134 = vmatpush1.msra.mxu0 0.0
        %1135 = vmatprep.subr.mxu0 0.0
        %1136 = vmatpush1.msra.mxu0 0.0
        %1137 = vmatprep.subr.mxu0 0.0
        %1138 = vmatpush1.msra.mxu0 0.0
        %1139 = vmatprep.subr.mxu0 0.0
        %1140 = vmatpush1.msra.mxu0 0.0
        %1141 = vmatprep.subr.mxu0 0.0
        %1142 = vmatpush1.msra.mxu0 0.0
        %1143 = vmatprep.subr.mxu0 0.0
        %1144 = vmatpush1.msra.mxu0 0.0
        %1145 = vmatprep.subr.mxu0 0.0
        %1146 = vmatpush1.msra.mxu0 0.0
        %1147 = vmatprep.subr.mxu0 0.0
        %1148 = vmatpush1.msra.mxu0 0.0
        %1149 = vmatprep.subr.mxu0 0.0
        %1150 = vmatpush1.msra.mxu0 0.0
        %1151 = vmatprep.subr.mxu0 0.0
        %1152 = vmatpush1.msra.mxu0 %v1102
        %1153 = vmatprep.subr.mxu0 0.0
        %1154 = vmatpush1.msra.mxu0 %v1101
        %1155 = vmatprep.subr.mxu0 0.0
        %1156 = vmatpush1.msra.mxu0 %v1100
        %1157 = vmatprep.subr.mxu0 0.0
        %1158 = vmatpush1.msra.mxu0 %v1099
        %1159 = vmatprep.subr.mxu0 0.0
        %1160 = vmatpush2.msra.mxu0 0.0
        %1161 = vmatprep.subr.mxu0 0.0
        %1162 = vmatpush2.msra.mxu0 0.0
        %1163 = vmatprep.subr.mxu0 0.0
        %1164 = vmatpush2.msra.mxu0 0.0
        %1165 = vmatprep.subr.mxu0 0.0
        %1166 = vmatpush2.msra.mxu0 0.0
        %1167 = vmatprep.subr.mxu0 0.0
        %1168 = vmatpush2.msra.mxu0 0.0
        %1169 = vmatprep.subr.mxu0 0.0
        %1170 = vmatpush2.msra.mxu0 0.0
        %1171 = vmatprep.subr.mxu0 0.0
        %1172 = vmatpush2.msra.mxu0 0.0
        %1173 = vmatprep.subr.mxu0 0.0
        %1174 = vmatpush2.msra.mxu0 0.0
        %1175 = vmatprep.subr.mxu0 0.0
        %1176 = vmatpush2.msra.mxu0 0.0
        %1177 = vmatprep.subr.mxu0 0.0
        %1178 = vmatpush2.msra.mxu0 0.0
        %1179 = vmatprep.subr.mxu0 0.0
        %1180 = vmatpush2.msra.mxu0 0.0
        %1181 = vmatprep.subr.mxu0 0.0
        %1182 = vmatpush2.msra.mxu0 0.0
        %1183 = vmatprep.subr.mxu0 0.0
        %1184 = vmatpush2.msra.mxu0 0.0
        %1185 = vmatprep.subr.mxu0 0.0
        %1186 = vmatpush2.msra.mxu0 0.0
        %1187 = vmatprep.subr.mxu0 0.0
        %1188 = vmatpush2.msra.mxu0 0.0
        %1189 = vmatprep.subr.mxu0 0.0
        %1190 = vmatpush2.msra.mxu0 0.0
        %1191 = vmatprep.mubr.f32.mxu0 0.0
        %1192 = vmatmul.mubr.f32.gmra.mxu0 %v1104
        %v1193 = vpop.f32.mrf.mxu0
        %v1194 = vadd.f32 0.0, %v1193
        %v1195 = vpop.f32.mrf.mxu0
        %1196 = vmatprep.mubr.f32.mxu0 0.0
        %1197 = vmatmul.mubr.f32.gmra.mxu0 %v1107
        %v1198 = vpop.f32.mrf.mxu0
        %v1199 = vadd.f32 0.0, %v1198
        %v1200 = vpop.f32.mrf.mxu0
        %1201 = vmatprep.mubr.f32.mxu0 0.0
        %1202 = vmatmul.mubr.f32.gmra.mxu0 %v1110
        %v1203 = vpop.f32.mrf.mxu0
        %v1204 = vadd.f32 0.0, %v1203
        %v1205 = vpop.f32.mrf.mxu0
        %1206 = vmatprep.mubr.f32.mxu0 0.0
        %1207 = vmatmul.mubr.f32.gmra.mxu0 %v1113
        %v1208 = vpop.f32.mrf.mxu0
        %v1209 = vadd.f32 0.0, %v1208
        %v1210 = vpop.f32.mrf.mxu0
        %1211 = vmatprep.mubr.f32.mxu0 0.0
        %1212 = vmatmul.mubr.f32.gmra.mxu0 %v1116
        %v1213 = vpop.f32.mrf.mxu0
        %v1214 = vadd.f32 0.0, %v1213
        %v1215 = vpop.f32.mrf.mxu0
        %1216 = vmatprep.mubr.f32.mxu0 0.0
        %1217 = vmatmul.mubr.f32.gmra.mxu0 %v1119
        %v1218 = vpop.f32.mrf.mxu0
        %v1219 = vadd.f32 0.0, %v1218
        %v1220 = vpop.f32.mrf.mxu0
        %1221 = vmatprep.mubr.f32.mxu0 0.0
        %1222 = vmatmul.mubr.f32.gmra.mxu0 %v1122
        %v1223 = vpop.f32.mrf.mxu0
        %v1224 = vadd.f32 0.0, %v1223
        %v1225 = vpop.f32.mrf.mxu0
        %1226 = vmatprep.mubr.f32.mxu0 0.0
        %1227 = vmatmul.mubr.f32.gmra.mxu0 %v1125
        %v1228 = vpop.f32.mrf.mxu0
        %v1229 = vadd.f32 0.0, %v1228
        %v1230 = vpop.f32.mrf.mxu0
        %1231 = vdwg.mxu0
        %v1232 = vadd.f32 %v1052, %v1194
        %v1233 = vadd.f32 %v1057, %v1199
        %v1234 = vadd.f32 %v1062, %v1204
        %v1235 = vadd.f32 %v1067, %v1209
        %v1236 = vadd.f32 %v1072, %v1214
        %v1237 = vadd.f32 %v1077, %v1219
        %v1238 = vadd.f32 %v1082, %v1224
        %v1239 = vadd.f32 %v1087, %v1229
        %v1240 = vld [vmem:[%s798] sm:$0xff]
        %v1241 = vld [vmem:[%s798 + $0x10] sm:$0xff]
        %v1242 = vld [vmem:[%s798 + $0x20] sm:$0xff]
        %v1243 = vld [vmem:[%s798 + $0x30] sm:$0xff]
        %v1244 = vld [vmem:[%s798 + $0x40] sm:$0xff]
        %v1245 = vld [vmem:[%s798 + $0x50] sm:$0xff]
        %v1246 = vld [vmem:[%s798 + $0x60] sm:$0xff]
        %v1247 = vld [vmem:[%s798 + $0x70] sm:$0xff]
        %s1248 = scalar_lea.vmem %s8, 96
        %v1249 = vld [vmem:[%s1248] sm:$0xff]
        %v1250 = vld [vmem:[%s1248 + $0x8] sm:$0xff]
        %v1251 = vld [vmem:[%s1248 + $0x10] sm:$0xff]
        %v1252 = vld [vmem:[%s1248 + $0x18] sm:$0xff]
        %v1254 = vsel %vm776, %v1240, 0
        %v1257 = vsel %vm776, %v1241, 0
        %v1260 = vsel %vm776, %v1242, 0
        %v1263 = vsel %vm776, %v1243, 0
        %v1266 = vsel %vm776, %v1244, 0
        %v1269 = vsel %vm776, %v1245, 0
        %v1272 = vsel %vm776, %v1246, 0
        %v1275 = vsel %vm776, %v1247, 0
        %1277 = vmatprep.subr.mxu0 0.0
        %1278 = vmatpush1.msra.mxu0 0.0
        %1279 = vmatprep.subr.mxu0 0.0
        %1280 = vmatpush1.msra.mxu0 0.0
        %1281 = vmatprep.subr.mxu0 0.0
        %1282 = vmatpush1.msra.mxu0 0.0
        %1283 = vmatprep.subr.mxu0 0.0
        %1284 = vmatpush1.msra.mxu0 0.0
        %1285 = vmatprep.subr.mxu0 0.0
        %1286 = vmatpush1.msra.mxu0 0.0
        %1287 = vmatprep.subr.mxu0 0.0
        %1288 = vmatpush1.msra.mxu0 0.0
        %1289 = vmatprep.subr.mxu0 0.0
        %1290 = vmatpush1.msra.mxu0 0.0
        %1291 = vmatprep.subr.mxu0 0.0
        %1292 = vmatpush1.msra.mxu0 0.0
        %1293 = vmatprep.subr.mxu0 0.0
        %1294 = vmatpush1.msra.mxu0 0.0
        %1295 = vmatprep.subr.mxu0 0.0
        %1296 = vmatpush1.msra.mxu0 0.0
        %1297 = vmatprep.subr.mxu0 0.0
        %1298 = vmatpush1.msra.mxu0 0.0
        %1299 = vmatprep.subr.mxu0 0.0
        %1300 = vmatpush1.msra.mxu0 0.0
        %1301 = vmatprep.subr.mxu0 0.0
        %1302 = vmatpush1.msra.mxu0 %v1252
        %1303 = vmatprep.subr.mxu0 0.0
        %1304 = vmatpush1.msra.mxu0 %v1251
        %1305 = vmatprep.subr.mxu0 0.0
        %1306 = vmatpush1.msra.mxu0 %v1250
        %1307 = vmatprep.subr.mxu0 0.0
        %1308 = vmatpush1.msra.mxu0 %v1249
        %1309 = vmatprep.subr.mxu0 0.0
        %1310 = vmatpush2.msra.mxu0 0.0
        %1311 = vmatprep.subr.mxu0 0.0
        %1312 = vmatpush2.msra.mxu0 0.0
        %1313 = vmatprep.subr.mxu0 0.0
        %1314 = vmatpush2.msra.mxu0 0.0
        %1315 = vmatprep.subr.mxu0 0.0
        %1316 = vmatpush2.msra.mxu0 0.0
        %1317 = vmatprep.subr.mxu0 0.0
        %1318 = vmatpush2.msra.mxu0 0.0
        %1319 = vmatprep.subr.mxu0 0.0
        %1320 = vmatpush2.msra.mxu0 0.0
        %1321 = vmatprep.subr.mxu0 0.0
        %1322 = vmatpush2.msra.mxu0 0.0
        %1323 = vmatprep.subr.mxu0 0.0
        %1324 = vmatpush2.msra.mxu0 0.0
        %1325 = vmatprep.subr.mxu0 0.0
        %1326 = vmatpush2.msra.mxu0 0.0
        %1327 = vmatprep.subr.mxu0 0.0
        %1328 = vmatpush2.msra.mxu0 0.0
        %1329 = vmatprep.subr.mxu0 0.0
        %1330 = vmatpush2.msra.mxu0 0.0
        %1331 = vmatprep.subr.mxu0 0.0
        %1332 = vmatpush2.msra.mxu0 0.0
        %1333 = vmatprep.subr.mxu0 0.0
        %1334 = vmatpush2.msra.mxu0 0.0
        %1335 = vmatprep.subr.mxu0 0.0
        %1336 = vmatpush2.msra.mxu0 0.0
        %1337 = vmatprep.subr.mxu0 0.0
        %1338 = vmatpush2.msra.mxu0 0.0
        %1339 = vmatprep.subr.mxu0 0.0
        %1340 = vmatpush2.msra.mxu0 0.0
        %1341 = vmatprep.mubr.f32.mxu0 0.0
        %1342 = vmatmul.mubr.f32.gmra.mxu0 %v1254
        %v1343 = vpop.f32.mrf.mxu0
        %v1344 = vadd.f32 0.0, %v1343
        %v1345 = vpop.f32.mrf.mxu0
        %1346 = vmatprep.mubr.f32.mxu0 0.0
        %1347 = vmatmul.mubr.f32.gmra.mxu0 %v1257
        %v1348 = vpop.f32.mrf.mxu0
        %v1349 = vadd.f32 0.0, %v1348
        %v1350 = vpop.f32.mrf.mxu0
        %1351 = vmatprep.mubr.f32.mxu0 0.0
        %1352 = vmatmul.mubr.f32.gmra.mxu0 %v1260
        %v1353 = vpop.f32.mrf.mxu0
        %v1354 = vadd.f32 0.0, %v1353
        %v1355 = vpop.f32.mrf.mxu0
        %1356 = vmatprep.mubr.f32.mxu0 0.0
        %1357 = vmatmul.mubr.f32.gmra.mxu0 %v1263
        %v1358 = vpop.f32.mrf.mxu0
        %v1359 = vadd.f32 0.0, %v1358
        %v1360 = vpop.f32.mrf.mxu0
        %1361 = vmatprep.mubr.f32.mxu0 0.0
        %1362 = vmatmul.mubr.f32.gmra.mxu0 %v1266
        %v1363 = vpop.f32.mrf.mxu0
        %v1364 = vadd.f32 0.0, %v1363
        %v1365 = vpop.f32.mrf.mxu0
        %1366 = vmatprep.mubr.f32.mxu0 0.0
        %1367 = vmatmul.mubr.f32.gmra.mxu0 %v1269
        %v1368 = vpop.f32.mrf.mxu0
        %v1369 = vadd.f32 0.0, %v1368
        %v1370 = vpop.f32.mrf.mxu0
        %1371 = vmatprep.mubr.f32.mxu0 0.0
        %1372 = vmatmul.mubr.f32.gmra.mxu0 %v1272
        %v1373 = vpop.f32.mrf.mxu0
        %v1374 = vadd.f32 0.0, %v1373
        %v1375 = vpop.f32.mrf.mxu0
        %1376 = vmatprep.mubr.f32.mxu0 0.0
        %1377 = vmatmul.mubr.f32.gmra.mxu0 %v1275
        %v1378 = vpop.f32.mrf.mxu0
        %v1379 = vadd.f32 0.0, %v1378
        %v1380 = vpop.f32.mrf.mxu0
        %1381 = vdwg.mxu0
        %v1382 = vadd.f32 %v1232, %v1344
        %v1383 = vadd.f32 %v1233, %v1349
        %v1384 = vadd.f32 %v1234, %v1354
        %v1385 = vadd.f32 %v1235, %v1359
        %v1386 = vadd.f32 %v1236, %v1364
        %v1387 = vadd.f32 %v1237, %v1369
        %v1388 = vadd.f32 %v1238, %v1374
        %v1389 = vadd.f32 %v1239, %v1379
        %v1390 = vld [vmem:[%s798 + $0x1] sm:$0xff]
        %v1391 = vld [vmem:[%s798 + $0x11] sm:$0xff]
        %v1392 = vld [vmem:[%s798 + $0x21] sm:$0xff]
        %v1393 = vld [vmem:[%s798 + $0x31] sm:$0xff]
        %v1394 = vld [vmem:[%s798 + $0x41] sm:$0xff]
        %v1395 = vld [vmem:[%s798 + $0x51] sm:$0xff]
        %v1396 = vld [vmem:[%s798 + $0x61] sm:$0xff]
        %v1397 = vld [vmem:[%s798 + $0x71] sm:$0xff]
        %s1398 = scalar_lea.vmem %s8, 128
        %v1399 = vld [vmem:[%s1398] sm:$0xff]
        %v1400 = vld [vmem:[%s1398 + $0x8] sm:$0xff]
        %v1401 = vld [vmem:[%s1398 + $0x10] sm:$0xff]
        %v1402 = vld [vmem:[%s1398 + $0x18] sm:$0xff]
        %v1404 = vsel %vm776, %v1390, 0
        %v1407 = vsel %vm776, %v1391, 0
        %v1410 = vsel %vm776, %v1392, 0
        %v1413 = vsel %vm776, %v1393, 0
        %v1416 = vsel %vm776, %v1394, 0
        %v1419 = vsel %vm776, %v1395, 0
        %v1422 = vsel %vm776, %v1396, 0
        %v1425 = vsel %vm776, %v1397, 0
        %1427 = vmatprep.subr.mxu0 0.0
        %1428 = vmatpush1.msra.mxu0 0.0
        %1429 = vmatprep.subr.mxu0 0.0
        %1430 = vmatpush1.msra.mxu0 0.0
        %1431 = vmatprep.subr.mxu0 0.0
        %1432 = vmatpush1.msra.mxu0 0.0
        %1433 = vmatprep.subr.mxu0 0.0
        %1434 = vmatpush1.msra.mxu0 0.0
        %1435 = vmatprep.subr.mxu0 0.0
        %1436 = vmatpush1.msra.mxu0 0.0
        %1437 = vmatprep.subr.mxu0 0.0
        %1438 = vmatpush1.msra.mxu0 0.0
        %1439 = vmatprep.subr.mxu0 0.0
        %1440 = vmatpush1.msra.mxu0 0.0
        %1441 = vmatprep.subr.mxu0 0.0
        %1442 = vmatpush1.msra.mxu0 0.0
        %1443 = vmatprep.subr.mxu0 0.0
        %1444 = vmatpush1.msra.mxu0 0.0
        %1445 = vmatprep.subr.mxu0 0.0
        %1446 = vmatpush1.msra.mxu0 0.0
        %1447 = vmatprep.subr.mxu0 0.0
        %1448 = vmatpush1.msra.mxu0 0.0
        %1449 = vmatprep.subr.mxu0 0.0
        %1450 = vmatpush1.msra.mxu0 0.0
        %1451 = vmatprep.subr.mxu0 0.0
        %1452 = vmatpush1.msra.mxu0 %v1402
        %1453 = vmatprep.subr.mxu0 0.0
        %1454 = vmatpush1.msra.mxu0 %v1401
        %1455 = vmatprep.subr.mxu0 0.0
        %1456 = vmatpush1.msra.mxu0 %v1400
        %1457 = vmatprep.subr.mxu0 0.0
        %1458 = vmatpush1.msra.mxu0 %v1399
        %1459 = vmatprep.subr.mxu0 0.0
        %1460 = vmatpush2.msra.mxu0 0.0
        %1461 = vmatprep.subr.mxu0 0.0
        %1462 = vmatpush2.msra.mxu0 0.0
        %1463 = vmatprep.subr.mxu0 0.0
        %1464 = vmatpush2.msra.mxu0 0.0
        %1465 = vmatprep.subr.mxu0 0.0
        %1466 = vmatpush2.msra.mxu0 0.0
        %1467 = vmatprep.subr.mxu0 0.0
        %1468 = vmatpush2.msra.mxu0 0.0
        %1469 = vmatprep.subr.mxu0 0.0
        %1470 = vmatpush2.msra.mxu0 0.0
        %1471 = vmatprep.subr.mxu0 0.0
        %1472 = vmatpush2.msra.mxu0 0.0
        %1473 = vmatprep.subr.mxu0 0.0
        %1474 = vmatpush2.msra.mxu0 0.0
        %1475 = vmatprep.subr.mxu0 0.0
        %1476 = vmatpush2.msra.mxu0 0.0
        %1477 = vmatprep.subr.mxu0 0.0
        %1478 = vmatpush2.msra.mxu0 0.0
        %1479 = vmatprep.subr.mxu0 0.0
        %1480 = vmatpush2.msra.mxu0 0.0
        %1481 = vmatprep.subr.mxu0 0.0
        %1482 = vmatpush2.msra.mxu0 0.0
        %1483 = vmatprep.subr.mxu0 0.0
        %1484 = vmatpush2.msra.mxu0 0.0
        %1485 = vmatprep.subr.mxu0 0.0
        %1486 = vmatpush2.msra.mxu0 0.0
        %1487 = vmatprep.subr.mxu0 0.0
        %1488 = vmatpush2.msra.mxu0 0.0
        %1489 = vmatprep.subr.mxu0 0.0
        %1490 = vmatpush2.msra.mxu0 0.0
        %1491 = vmatprep.mubr.f32.mxu0 0.0
        %1492 = vmatmul.mubr.f32.gmra.mxu0 %v1404
        %v1493 = vpop.f32.mrf.mxu0
        %v1494 = vadd.f32 0.0, %v1493
        %v1495 = vpop.f32.mrf.mxu0
        %1496 = vmatprep.mubr.f32.mxu0 0.0
        %1497 = vmatmul.mubr.f32.gmra.mxu0 %v1407
        %v1498 = vpop.f32.mrf.mxu0
        %v1499 = vadd.f32 0.0, %v1498
        %v1500 = vpop.f32.mrf.mxu0
        %1501 = vmatprep.mubr.f32.mxu0 0.0
        %1502 = vmatmul.mubr.f32.gmra.mxu0 %v1410
        %v1503 = vpop.f32.mrf.mxu0
        %v1504 = vadd.f32 0.0, %v1503
        %v1505 = vpop.f32.mrf.mxu0
        %1506 = vmatprep.mubr.f32.mxu0 0.0
        %1507 = vmatmul.mubr.f32.gmra.mxu0 %v1413
        %v1508 = vpop.f32.mrf.mxu0
        %v1509 = vadd.f32 0.0, %v1508
        %v1510 = vpop.f32.mrf.mxu0
        %1511 = vmatprep.mubr.f32.mxu0 0.0
        %1512 = vmatmul.mubr.f32.gmra.mxu0 %v1416
        %v1513 = vpop.f32.mrf.mxu0
        %v1514 = vadd.f32 0.0, %v1513
        %v1515 = vpop.f32.mrf.mxu0
        %1516 = vmatprep.mubr.f32.mxu0 0.0
        %1517 = vmatmul.mubr.f32.gmra.mxu0 %v1419
        %v1518 = vpop.f32.mrf.mxu0
        %v1519 = vadd.f32 0.0, %v1518
        %v1520 = vpop.f32.mrf.mxu0
        %1521 = vmatprep.mubr.f32.mxu0 0.0
        %1522 = vmatmul.mubr.f32.gmra.mxu0 %v1422
        %v1523 = vpop.f32.mrf.mxu0
        %v1524 = vadd.f32 0.0, %v1523
        %v1525 = vpop.f32.mrf.mxu0
        %1526 = vmatprep.mubr.f32.mxu0 0.0
        %1527 = vmatmul.mubr.f32.gmra.mxu0 %v1425
        %v1528 = vpop.f32.mrf.mxu0
        %v1529 = vadd.f32 0.0, %v1528
        %v1530 = vpop.f32.mrf.mxu0
        %1531 = vdwg.mxu0
        %v1532 = vadd.f32 %v1382, %v1494
        %v1533 = vadd.f32 %v1383, %v1499
        %v1534 = vadd.f32 %v1384, %v1504
        %v1535 = vadd.f32 %v1385, %v1509
        %v1536 = vadd.f32 %v1386, %v1514
        %v1537 = vadd.f32 %v1387, %v1519
        %v1538 = vadd.f32 %v1388, %v1524
        %v1539 = vadd.f32 %v1389, %v1529
        %v1540 = vld [vmem:[%s798 + $0x2] sm:$0xff]
        %v1541 = vld [vmem:[%s798 + $0x12] sm:$0xff]
        %v1542 = vld [vmem:[%s798 + $0x22] sm:$0xff]
        %v1543 = vld [vmem:[%s798 + $0x32] sm:$0xff]
        %v1544 = vld [vmem:[%s798 + $0x42] sm:$0xff]
        %v1545 = vld [vmem:[%s798 + $0x52] sm:$0xff]
        %v1546 = vld [vmem:[%s798 + $0x62] sm:$0xff]
        %v1547 = vld [vmem:[%s798 + $0x72] sm:$0xff]
        %s1548 = scalar_lea.vmem %s8, 160
        %v1549 = vld [vmem:[%s1548] sm:$0xff]
        %v1550 = vld [vmem:[%s1548 + $0x8] sm:$0xff]
        %v1551 = vld [vmem:[%s1548 + $0x10] sm:$0xff]
        %v1552 = vld [vmem:[%s1548 + $0x18] sm:$0xff]
        %v1554 = vsel %vm776, %v1540, 0
        %v1557 = vsel %vm776, %v1541, 0
        %v1560 = vsel %vm776, %v1542, 0
        %v1563 = vsel %vm776, %v1543, 0
        %v1566 = vsel %vm776, %v1544, 0
        %v1569 = vsel %vm776, %v1545, 0
        %v1572 = vsel %vm776, %v1546, 0
        %v1575 = vsel %vm776, %v1547, 0
        %1577 = vmatprep.subr.mxu0 0.0
        %1578 = vmatpush1.msra.mxu0 0.0
        %1579 = vmatprep.subr.mxu0 0.0
        %1580 = vmatpush1.msra.mxu0 0.0
        %1581 = vmatprep.subr.mxu0 0.0
        %1582 = vmatpush1.msra.mxu0 0.0
        %1583 = vmatprep.subr.mxu0 0.0
        %1584 = vmatpush1.msra.mxu0 0.0
        %1585 = vmatprep.subr.mxu0 0.0
        %1586 = vmatpush1.msra.mxu0 0.0
        %1587 = vmatprep.subr.mxu0 0.0
        %1588 = vmatpush1.msra.mxu0 0.0
        %1589 = vmatprep.subr.mxu0 0.0
        %1590 = vmatpush1.msra.mxu0 0.0
        %1591 = vmatprep.subr.mxu0 0.0
        %1592 = vmatpush1.msra.mxu0 0.0
        %1593 = vmatprep.subr.mxu0 0.0
        %1594 = vmatpush1.msra.mxu0 0.0
        %1595 = vmatprep.subr.mxu0 0.0
        %1596 = vmatpush1.msra.mxu0 0.0
        %1597 = vmatprep.subr.mxu0 0.0
        %1598 = vmatpush1.msra.mxu0 0.0
        %1599 = vmatprep.subr.mxu0 0.0
        %1600 = vmatpush1.msra.mxu0 0.0
        %1601 = vmatprep.subr.mxu0 0.0
        %1602 = vmatpush1.msra.mxu0 %v1552
        %1603 = vmatprep.subr.mxu0 0.0
        %1604 = vmatpush1.msra.mxu0 %v1551
        %1605 = vmatprep.subr.mxu0 0.0
        %1606 = vmatpush1.msra.mxu0 %v1550
        %1607 = vmatprep.subr.mxu0 0.0
        %1608 = vmatpush1.msra.mxu0 %v1549
        %1609 = vmatprep.subr.mxu0 0.0
        %1610 = vmatpush2.msra.mxu0 0.0
        %1611 = vmatprep.subr.mxu0 0.0
        %1612 = vmatpush2.msra.mxu0 0.0
        %1613 = vmatprep.subr.mxu0 0.0
        %1614 = vmatpush2.msra.mxu0 0.0
        %1615 = vmatprep.subr.mxu0 0.0
        %1616 = vmatpush2.msra.mxu0 0.0
        %1617 = vmatprep.subr.mxu0 0.0
        %1618 = vmatpush2.msra.mxu0 0.0
        %1619 = vmatprep.subr.mxu0 0.0
        %1620 = vmatpush2.msra.mxu0 0.0
        %1621 = vmatprep.subr.mxu0 0.0
        %1622 = vmatpush2.msra.mxu0 0.0
        %1623 = vmatprep.subr.mxu0 0.0
        %1624 = vmatpush2.msra.mxu0 0.0
        %1625 = vmatprep.subr.mxu0 0.0
        %1626 = vmatpush2.msra.mxu0 0.0
        %1627 = vmatprep.subr.mxu0 0.0
        %1628 = vmatpush2.msra.mxu0 0.0
        %1629 = vmatprep.subr.mxu0 0.0
        %1630 = vmatpush2.msra.mxu0 0.0
        %1631 = vmatprep.subr.mxu0 0.0
        %1632 = vmatpush2.msra.mxu0 0.0
        %1633 = vmatprep.subr.mxu0 0.0
        %1634 = vmatpush2.msra.mxu0 0.0
        %1635 = vmatprep.subr.mxu0 0.0
        %1636 = vmatpush2.msra.mxu0 0.0
        %1637 = vmatprep.subr.mxu0 0.0
        %1638 = vmatpush2.msra.mxu0 0.0
        %1639 = vmatprep.subr.mxu0 0.0
        %1640 = vmatpush2.msra.mxu0 0.0
        %1641 = vmatprep.mubr.f32.mxu0 0.0
        %1642 = vmatmul.mubr.f32.gmra.mxu0 %v1554
        %v1643 = vpop.f32.mrf.mxu0
        %v1644 = vadd.f32 0.0, %v1643
        %v1645 = vpop.f32.mrf.mxu0
        %1646 = vmatprep.mubr.f32.mxu0 0.0
        %1647 = vmatmul.mubr.f32.gmra.mxu0 %v1557
        %v1648 = vpop.f32.mrf.mxu0
        %v1649 = vadd.f32 0.0, %v1648
        %v1650 = vpop.f32.mrf.mxu0
        %1651 = vmatprep.mubr.f32.mxu0 0.0
        %1652 = vmatmul.mubr.f32.gmra.mxu0 %v1560
        %v1653 = vpop.f32.mrf.mxu0
        %v1654 = vadd.f32 0.0, %v1653
        %v1655 = vpop.f32.mrf.mxu0
        %1656 = vmatprep.mubr.f32.mxu0 0.0
        %1657 = vmatmul.mubr.f32.gmra.mxu0 %v1563
        %v1658 = vpop.f32.mrf.mxu0
        %v1659 = vadd.f32 0.0, %v1658
        %v1660 = vpop.f32.mrf.mxu0
        %1661 = vmatprep.mubr.f32.mxu0 0.0
        %1662 = vmatmul.mubr.f32.gmra.mxu0 %v1566
        %v1663 = vpop.f32.mrf.mxu0
        %v1664 = vadd.f32 0.0, %v1663
        %v1665 = vpop.f32.mrf.mxu0
        %1666 = vmatprep.mubr.f32.mxu0 0.0
        %1667 = vmatmul.mubr.f32.gmra.mxu0 %v1569
        %v1668 = vpop.f32.mrf.mxu0
        %v1669 = vadd.f32 0.0, %v1668
        %v1670 = vpop.f32.mrf.mxu0
        %1671 = vmatprep.mubr.f32.mxu0 0.0
        %1672 = vmatmul.mubr.f32.gmra.mxu0 %v1572
        %v1673 = vpop.f32.mrf.mxu0
        %v1674 = vadd.f32 0.0, %v1673
        %v1675 = vpop.f32.mrf.mxu0
        %1676 = vmatprep.mubr.f32.mxu0 0.0
        %1677 = vmatmul.mubr.f32.gmra.mxu0 %v1575
        %v1678 = vpop.f32.mrf.mxu0
        %v1679 = vadd.f32 0.0, %v1678
        %v1680 = vpop.f32.mrf.mxu0
        %1681 = vdwg.mxu0
        %v1682 = vadd.f32 %v1532, %v1644
        %v1683 = vadd.f32 %v1533, %v1649
        %v1684 = vadd.f32 %v1534, %v1654
        %v1685 = vadd.f32 %v1535, %v1659
        %v1686 = vadd.f32 %v1536, %v1664
        %v1687 = vadd.f32 %v1537, %v1669
        %v1688 = vadd.f32 %v1538, %v1674
        %v1689 = vadd.f32 %v1539, %v1679
        %s1690 = scalar_lea.vmem [#allocation2], 32
        %v1691 = vld [vmem:[%s1690] sm:$0xff]
        %v1692 = vld [vmem:[%s1690 + $0x10] sm:$0xff]
        %v1693 = vld [vmem:[%s1690 + $0x20] sm:$0xff]
        %v1694 = vld [vmem:[%s1690 + $0x30] sm:$0xff]
        %v1695 = vld [vmem:[%s1690 + $0x40] sm:$0xff]
        %v1696 = vld [vmem:[%s1690 + $0x50] sm:$0xff]
        %v1697 = vld [vmem:[%s1690 + $0x60] sm:$0xff]
        %v1698 = vld [vmem:[%s1690 + $0x70] sm:$0xff]
        %s1699 = scalar_lea.vmem %s8, 192
        %v1700 = vld [vmem:[%s1699] sm:$0xff]
        %v1701 = vld [vmem:[%s1699 + $0x8] sm:$0xff]
        %v1702 = vld [vmem:[%s1699 + $0x10] sm:$0xff]
        %v1703 = vld [vmem:[%s1699 + $0x18] sm:$0xff]
        %v1705 = vsel %vm776, %v1691, 0
        %v1708 = vsel %vm776, %v1692, 0
        %v1711 = vsel %vm776, %v1693, 0
        %v1714 = vsel %vm776, %v1694, 0
        %v1717 = vsel %vm776, %v1695, 0
        %v1720 = vsel %vm776, %v1696, 0
        %v1723 = vsel %vm776, %v1697, 0
        %v1726 = vsel %vm776, %v1698, 0
        %1728 = vmatprep.subr.mxu0 0.0
        %1729 = vmatpush1.msra.mxu0 0.0
        %1730 = vmatprep.subr.mxu0 0.0
        %1731 = vmatpush1.msra.mxu0 0.0
        %1732 = vmatprep.subr.mxu0 0.0
        %1733 = vmatpush1.msra.mxu0 0.0
        %1734 = vmatprep.subr.mxu0 0.0
        %1735 = vmatpush1.msra.mxu0 0.0
        %1736 = vmatprep.subr.mxu0 0.0
        %1737 = vmatpush1.msra.mxu0 0.0
        %1738 = vmatprep.subr.mxu0 0.0
        %1739 = vmatpush1.msra.mxu0 0.0
        %1740 = vmatprep.subr.mxu0 0.0
        %1741 = vmatpush1.msra.mxu0 0.0
        %1742 = vmatprep.subr.mxu0 0.0
        %1743 = vmatpush1.msra.mxu0 0.0
        %1744 = vmatprep.subr.mxu0 0.0
        %1745 = vmatpush1.msra.mxu0 0.0
        %1746 = vmatprep.subr.mxu0 0.0
        %1747 = vmatpush1.msra.mxu0 0.0
        %1748 = vmatprep.subr.mxu0 0.0
        %1749 = vmatpush1.msra.mxu0 0.0
        %1750 = vmatprep.subr.mxu0 0.0
        %1751 = vmatpush1.msra.mxu0 0.0
        %1752 = vmatprep.subr.mxu0 0.0
        %1753 = vmatpush1.msra.mxu0 %v1703
        %1754 = vmatprep.subr.mxu0 0.0
        %1755 = vmatpush1.msra.mxu0 %v1702
        %1756 = vmatprep.subr.mxu0 0.0
        %1757 = vmatpush1.msra.mxu0 %v1701
        %1758 = vmatprep.subr.mxu0 0.0
        %1759 = vmatpush1.msra.mxu0 %v1700
        %1760 = vmatprep.subr.mxu0 0.0
        %1761 = vmatpush2.msra.mxu0 0.0
        %1762 = vmatprep.subr.mxu0 0.0
        %1763 = vmatpush2.msra.mxu0 0.0
        %1764 = vmatprep.subr.mxu0 0.0
        %1765 = vmatpush2.msra.mxu0 0.0
        %1766 = vmatprep.subr.mxu0 0.0
        %1767 = vmatpush2.msra.mxu0 0.0
        %1768 = vmatprep.subr.mxu0 0.0
        %1769 = vmatpush2.msra.mxu0 0.0
        %1770 = vmatprep.subr.mxu0 0.0
        %1771 = vmatpush2.msra.mxu0 0.0
        %1772 = vmatprep.subr.mxu0 0.0
        %1773 = vmatpush2.msra.mxu0 0.0
        %1774 = vmatprep.subr.mxu0 0.0
        %1775 = vmatpush2.msra.mxu0 0.0
        %1776 = vmatprep.subr.mxu0 0.0
        %1777 = vmatpush2.msra.mxu0 0.0
        %1778 = vmatprep.subr.mxu0 0.0
        %1779 = vmatpush2.msra.mxu0 0.0
        %1780 = vmatprep.subr.mxu0 0.0
        %1781 = vmatpush2.msra.mxu0 0.0
        %1782 = vmatprep.subr.mxu0 0.0
        %1783 = vmatpush2.msra.mxu0 0.0
        %1784 = vmatprep.subr.mxu0 0.0
        %1785 = vmatpush2.msra.mxu0 0.0
        %1786 = vmatprep.subr.mxu0 0.0
        %1787 = vmatpush2.msra.mxu0 0.0
        %1788 = vmatprep.subr.mxu0 0.0
        %1789 = vmatpush2.msra.mxu0 0.0
        %1790 = vmatprep.subr.mxu0 0.0
        %1791 = vmatpush2.msra.mxu0 0.0
        %1792 = vmatprep.mubr.f32.mxu0 0.0
        %1793 = vmatmul.mubr.f32.gmra.mxu0 %v1705
        %v1794 = vpop.f32.mrf.mxu0
        %v1795 = vadd.f32 0.0, %v1794
        %v1796 = vpop.f32.mrf.mxu0
        %1797 = vmatprep.mubr.f32.mxu0 0.0
        %1798 = vmatmul.mubr.f32.gmra.mxu0 %v1708
        %v1799 = vpop.f32.mrf.mxu0
        %v1800 = vadd.f32 0.0, %v1799
        %v1801 = vpop.f32.mrf.mxu0
        %1802 = vmatprep.mubr.f32.mxu0 0.0
        %1803 = vmatmul.mubr.f32.gmra.mxu0 %v1711
        %v1804 = vpop.f32.mrf.mxu0
        %v1805 = vadd.f32 0.0, %v1804
        %v1806 = vpop.f32.mrf.mxu0
        %1807 = vmatprep.mubr.f32.mxu0 0.0
        %1808 = vmatmul.mubr.f32.gmra.mxu0 %v1714
        %v1809 = vpop.f32.mrf.mxu0
        %v1810 = vadd.f32 0.0, %v1809
        %v1811 = vpop.f32.mrf.mxu0
        %1812 = vmatprep.mubr.f32.mxu0 0.0
        %1813 = vmatmul.mubr.f32.gmra.mxu0 %v1717
        %v1814 = vpop.f32.mrf.mxu0
        %v1815 = vadd.f32 0.0, %v1814
        %v1816 = vpop.f32.mrf.mxu0
        %1817 = vmatprep.mubr.f32.mxu0 0.0
        %1818 = vmatmul.mubr.f32.gmra.mxu0 %v1720
        %v1819 = vpop.f32.mrf.mxu0
        %v1820 = vadd.f32 0.0, %v1819
        %v1821 = vpop.f32.mrf.mxu0
        %1822 = vmatprep.mubr.f32.mxu0 0.0
        %1823 = vmatmul.mubr.f32.gmra.mxu0 %v1723
        %v1824 = vpop.f32.mrf.mxu0
        %v1825 = vadd.f32 0.0, %v1824
        %v1826 = vpop.f32.mrf.mxu0
        %1827 = vmatprep.mubr.f32.mxu0 0.0
        %1828 = vmatmul.mubr.f32.gmra.mxu0 %v1726
        %v1829 = vpop.f32.mrf.mxu0
        %v1830 = vadd.f32 0.0, %v1829
        %v1831 = vpop.f32.mrf.mxu0
        %1832 = vdwg.mxu0
        %v1833 = vadd.f32 %v1682, %v1795
        %v1834 = vadd.f32 %v1683, %v1800
        %v1835 = vadd.f32 %v1684, %v1805
        %v1836 = vadd.f32 %v1685, %v1810
        %v1837 = vadd.f32 %v1686, %v1815
        %v1838 = vadd.f32 %v1687, %v1820
        %v1839 = vadd.f32 %v1688, %v1825
        %v1840 = vadd.f32 %v1689, %v1830
        %v1841 = vld [vmem:[%s1690 + $0x1] sm:$0xff]
        %v1842 = vld [vmem:[%s1690 + $0x11] sm:$0xff]
        %v1843 = vld [vmem:[%s1690 + $0x21] sm:$0xff]
        %v1844 = vld [vmem:[%s1690 + $0x31] sm:$0xff]
        %v1845 = vld [vmem:[%s1690 + $0x41] sm:$0xff]
        %v1846 = vld [vmem:[%s1690 + $0x51] sm:$0xff]
        %v1847 = vld [vmem:[%s1690 + $0x61] sm:$0xff]
        %v1848 = vld [vmem:[%s1690 + $0x71] sm:$0xff]
        %s1849 = scalar_lea.vmem %s8, 224
        %v1850 = vld [vmem:[%s1849] sm:$0xff]
        %v1851 = vld [vmem:[%s1849 + $0x8] sm:$0xff]
        %v1852 = vld [vmem:[%s1849 + $0x10] sm:$0xff]
        %v1853 = vld [vmem:[%s1849 + $0x18] sm:$0xff]
        %v1855 = vsel %vm776, %v1841, 0
        %v1858 = vsel %vm776, %v1842, 0
        %v1861 = vsel %vm776, %v1843, 0
        %v1864 = vsel %vm776, %v1844, 0
        %v1867 = vsel %vm776, %v1845, 0
        %v1870 = vsel %vm776, %v1846, 0
        %v1873 = vsel %vm776, %v1847, 0
        %v1876 = vsel %vm776, %v1848, 0
        %1878 = vmatprep.subr.mxu0 0.0
        %1879 = vmatpush1.msra.mxu0 0.0
        %1880 = vmatprep.subr.mxu0 0.0
        %1881 = vmatpush1.msra.mxu0 0.0
        %1882 = vmatprep.subr.mxu0 0.0
        %1883 = vmatpush1.msra.mxu0 0.0
        %1884 = vmatprep.subr.mxu0 0.0
        %1885 = vmatpush1.msra.mxu0 0.0
        %1886 = vmatprep.subr.mxu0 0.0
        %1887 = vmatpush1.msra.mxu0 0.0
        %1888 = vmatprep.subr.mxu0 0.0
        %1889 = vmatpush1.msra.mxu0 0.0
        %1890 = vmatprep.subr.mxu0 0.0
        %1891 = vmatpush1.msra.mxu0 0.0
        %1892 = vmatprep.subr.mxu0 0.0
        %1893 = vmatpush1.msra.mxu0 0.0
        %1894 = vmatprep.subr.mxu0 0.0
        %1895 = vmatpush1.msra.mxu0 0.0
        %1896 = vmatprep.subr.mxu0 0.0
        %1897 = vmatpush1.msra.mxu0 0.0
        %1898 = vmatprep.subr.mxu0 0.0
        %1899 = vmatpush1.msra.mxu0 0.0
        %1900 = vmatprep.subr.mxu0 0.0
        %1901 = vmatpush1.msra.mxu0 0.0
        %1902 = vmatprep.subr.mxu0 0.0
        %1903 = vmatpush1.msra.mxu0 %v1853
        %1904 = vmatprep.subr.mxu0 0.0
        %1905 = vmatpush1.msra.mxu0 %v1852
        %1906 = vmatprep.subr.mxu0 0.0
        %1907 = vmatpush1.msra.mxu0 %v1851
        %1908 = vmatprep.subr.mxu0 0.0
        %1909 = vmatpush1.msra.mxu0 %v1850
        %1910 = vmatprep.subr.mxu0 0.0
        %1911 = vmatpush2.msra.mxu0 0.0
        %1912 = vmatprep.subr.mxu0 0.0
        %1913 = vmatpush2.msra.mxu0 0.0
        %1914 = vmatprep.subr.mxu0 0.0
        %1915 = vmatpush2.msra.mxu0 0.0
        %1916 = vmatprep.subr.mxu0 0.0
        %1917 = vmatpush2.msra.mxu0 0.0
        %1918 = vmatprep.subr.mxu0 0.0
        %1919 = vmatpush2.msra.mxu0 0.0
        %1920 = vmatprep.subr.mxu0 0.0
        %1921 = vmatpush2.msra.mxu0 0.0
        %1922 = vmatprep.subr.mxu0 0.0
        %1923 = vmatpush2.msra.mxu0 0.0
        %1924 = vmatprep.subr.mxu0 0.0
        %1925 = vmatpush2.msra.mxu0 0.0
        %1926 = vmatprep.subr.mxu0 0.0
        %1927 = vmatpush2.msra.mxu0 0.0
        %1928 = vmatprep.subr.mxu0 0.0
        %1929 = vmatpush2.msra.mxu0 0.0
        %1930 = vmatprep.subr.mxu0 0.0
        %1931 = vmatpush2.msra.mxu0 0.0
        %1932 = vmatprep.subr.mxu0 0.0
        %1933 = vmatpush2.msra.mxu0 0.0
        %1934 = vmatprep.subr.mxu0 0.0
        %1935 = vmatpush2.msra.mxu0 0.0
        %1936 = vmatprep.subr.mxu0 0.0
        %1937 = vmatpush2.msra.mxu0 0.0
        %1938 = vmatprep.subr.mxu0 0.0
        %1939 = vmatpush2.msra.mxu0 0.0
        %1940 = vmatprep.subr.mxu0 0.0
        %1941 = vmatpush2.msra.mxu0 0.0
        %1942 = vmatprep.mubr.f32.mxu0 0.0
        %1943 = vmatmul.mubr.f32.gmra.mxu0 %v1855
        %v1944 = vpop.f32.mrf.mxu0
        %v1945 = vadd.f32 0.0, %v1944
        %v1946 = vpop.f32.mrf.mxu0
        %1947 = vmatprep.mubr.f32.mxu0 0.0
        %1948 = vmatmul.mubr.f32.gmra.mxu0 %v1858
        %v1949 = vpop.f32.mrf.mxu0
        %v1950 = vadd.f32 0.0, %v1949
        %v1951 = vpop.f32.mrf.mxu0
        %1952 = vmatprep.mubr.f32.mxu0 0.0
        %1953 = vmatmul.mubr.f32.gmra.mxu0 %v1861
        %v1954 = vpop.f32.mrf.mxu0
        %v1955 = vadd.f32 0.0, %v1954
        %v1956 = vpop.f32.mrf.mxu0
        %1957 = vmatprep.mubr.f32.mxu0 0.0
        %1958 = vmatmul.mubr.f32.gmra.mxu0 %v1864
        %v1959 = vpop.f32.mrf.mxu0
        %v1960 = vadd.f32 0.0, %v1959
        %v1961 = vpop.f32.mrf.mxu0
        %1962 = vmatprep.mubr.f32.mxu0 0.0
        %1963 = vmatmul.mubr.f32.gmra.mxu0 %v1867
        %v1964 = vpop.f32.mrf.mxu0
        %v1965 = vadd.f32 0.0, %v1964
        %v1966 = vpop.f32.mrf.mxu0
        %1967 = vmatprep.mubr.f32.mxu0 0.0
        %1968 = vmatmul.mubr.f32.gmra.mxu0 %v1870
        %v1969 = vpop.f32.mrf.mxu0
        %v1970 = vadd.f32 0.0, %v1969
        %v1971 = vpop.f32.mrf.mxu0
        %1972 = vmatprep.mubr.f32.mxu0 0.0
        %1973 = vmatmul.mubr.f32.gmra.mxu0 %v1873
        %v1974 = vpop.f32.mrf.mxu0
        %v1975 = vadd.f32 0.0, %v1974
        %v1976 = vpop.f32.mrf.mxu0
        %1977 = vmatprep.mubr.f32.mxu0 0.0
        %1978 = vmatmul.mubr.f32.gmra.mxu0 %v1876
        %v1979 = vpop.f32.mrf.mxu0
        %v1980 = vadd.f32 0.0, %v1979
        %v1981 = vpop.f32.mrf.mxu0
        %1982 = vdwg.mxu0
        %v1983 = vadd.f32 %v1833, %v1945
        %v1984 = vadd.f32 %v1834, %v1950
        %v1985 = vadd.f32 %v1835, %v1955
        %v1986 = vadd.f32 %v1836, %v1960
        %v1987 = vadd.f32 %v1837, %v1965
        %v1988 = vadd.f32 %v1838, %v1970
        %v1989 = vadd.f32 %v1839, %v1975
        %v1990 = vadd.f32 %v1840, %v1980
        %v1991 = vld [vmem:[%s1690 + $0x2] sm:$0xff]
        %v1992 = vld [vmem:[%s1690 + $0x12] sm:$0xff]
        %v1993 = vld [vmem:[%s1690 + $0x22] sm:$0xff]
        %v1994 = vld [vmem:[%s1690 + $0x32] sm:$0xff]
        %v1995 = vld [vmem:[%s1690 + $0x42] sm:$0xff]
        %v1996 = vld [vmem:[%s1690 + $0x52] sm:$0xff]
        %v1997 = vld [vmem:[%s1690 + $0x62] sm:$0xff]
        %v1998 = vld [vmem:[%s1690 + $0x72] sm:$0xff]
        %s1999 = scalar_lea.vmem %s8, 256
        %v2000 = vld [vmem:[%s1999] sm:$0xff]
        %v2001 = vld [vmem:[%s1999 + $0x8] sm:$0xff]
        %v2002 = vld [vmem:[%s1999 + $0x10] sm:$0xff]
        %v2003 = vld [vmem:[%s1999 + $0x18] sm:$0xff]
        %v2005 = vsel %vm776, %v1991, 0
        %v2008 = vsel %vm776, %v1992, 0
        %v2011 = vsel %vm776, %v1993, 0
        %v2014 = vsel %vm776, %v1994, 0
        %v2017 = vsel %vm776, %v1995, 0
        %v2020 = vsel %vm776, %v1996, 0
        %v2023 = vsel %vm776, %v1997, 0
        %v2026 = vsel %vm776, %v1998, 0
        %2028 = vmatprep.subr.mxu0 0.0
        %2029 = vmatpush1.msra.mxu0 0.0
        %2030 = vmatprep.subr.mxu0 0.0
        %2031 = vmatpush1.msra.mxu0 0.0
        %2032 = vmatprep.subr.mxu0 0.0
        %2033 = vmatpush1.msra.mxu0 0.0
        %2034 = vmatprep.subr.mxu0 0.0
        %2035 = vmatpush1.msra.mxu0 0.0
        %2036 = vmatprep.subr.mxu0 0.0
        %2037 = vmatpush1.msra.mxu0 0.0
        %2038 = vmatprep.subr.mxu0 0.0
        %2039 = vmatpush1.msra.mxu0 0.0
        %2040 = vmatprep.subr.mxu0 0.0
        %2041 = vmatpush1.msra.mxu0 0.0
        %2042 = vmatprep.subr.mxu0 0.0
        %2043 = vmatpush1.msra.mxu0 0.0
        %2044 = vmatprep.subr.mxu0 0.0
        %2045 = vmatpush1.msra.mxu0 0.0
        %2046 = vmatprep.subr.mxu0 0.0
        %2047 = vmatpush1.msra.mxu0 0.0
        %2048 = vmatprep.subr.mxu0 0.0
        %2049 = vmatpush1.msra.mxu0 0.0
        %2050 = vmatprep.subr.mxu0 0.0
        %2051 = vmatpush1.msra.mxu0 0.0
        %2052 = vmatprep.subr.mxu0 0.0
        %2053 = vmatpush1.msra.mxu0 %v2003
        %2054 = vmatprep.subr.mxu0 0.0
        %2055 = vmatpush1.msra.mxu0 %v2002
        %2056 = vmatprep.subr.mxu0 0.0
        %2057 = vmatpush1.msra.mxu0 %v2001
        %2058 = vmatprep.subr.mxu0 0.0
        %2059 = vmatpush1.msra.mxu0 %v2000
        %2060 = vmatprep.subr.mxu0 0.0
        %2061 = vmatpush2.msra.mxu0 0.0
        %2062 = vmatprep.subr.mxu0 0.0
        %2063 = vmatpush2.msra.mxu0 0.0
        %2064 = vmatprep.subr.mxu0 0.0
        %2065 = vmatpush2.msra.mxu0 0.0
        %2066 = vmatprep.subr.mxu0 0.0
        %2067 = vmatpush2.msra.mxu0 0.0
        %2068 = vmatprep.subr.mxu0 0.0
        %2069 = vmatpush2.msra.mxu0 0.0
        %2070 = vmatprep.subr.mxu0 0.0
        %2071 = vmatpush2.msra.mxu0 0.0
        %2072 = vmatprep.subr.mxu0 0.0
        %2073 = vmatpush2.msra.mxu0 0.0
        %2074 = vmatprep.subr.mxu0 0.0
        %2075 = vmatpush2.msra.mxu0 0.0
        %2076 = vmatprep.subr.mxu0 0.0
        %2077 = vmatpush2.msra.mxu0 0.0
        %2078 = vmatprep.subr.mxu0 0.0
        %2079 = vmatpush2.msra.mxu0 0.0
        %2080 = vmatprep.subr.mxu0 0.0
        %2081 = vmatpush2.msra.mxu0 0.0
        %2082 = vmatprep.subr.mxu0 0.0
        %2083 = vmatpush2.msra.mxu0 0.0
        %2084 = vmatprep.subr.mxu0 0.0
        %2085 = vmatpush2.msra.mxu0 0.0
        %2086 = vmatprep.subr.mxu0 0.0
        %2087 = vmatpush2.msra.mxu0 0.0
        %2088 = vmatprep.subr.mxu0 0.0
        %2089 = vmatpush2.msra.mxu0 0.0
        %2090 = vmatprep.subr.mxu0 0.0
        %2091 = vmatpush2.msra.mxu0 0.0
        %2092 = vmatprep.mubr.f32.mxu0 0.0
        %2093 = vmatmul.mubr.f32.gmra.mxu0 %v2005
        %v2094 = vpop.f32.mrf.mxu0
        %v2095 = vadd.f32 0.0, %v2094
        %v2096 = vpop.f32.mrf.mxu0
        %2097 = vmatprep.mubr.f32.mxu0 0.0
        %2098 = vmatmul.mubr.f32.gmra.mxu0 %v2008
        %v2099 = vpop.f32.mrf.mxu0
        %v2100 = vadd.f32 0.0, %v2099
        %v2101 = vpop.f32.mrf.mxu0
        %2102 = vmatprep.mubr.f32.mxu0 0.0
        %2103 = vmatmul.mubr.f32.gmra.mxu0 %v2011
        %v2104 = vpop.f32.mrf.mxu0
        %v2105 = vadd.f32 0.0, %v2104
        %v2106 = vpop.f32.mrf.mxu0
        %2107 = vmatprep.mubr.f32.mxu0 0.0
        %2108 = vmatmul.mubr.f32.gmra.mxu0 %v2014
        %v2109 = vpop.f32.mrf.mxu0
        %v2110 = vadd.f32 0.0, %v2109
        %v2111 = vpop.f32.mrf.mxu0
        %2112 = vmatprep.mubr.f32.mxu0 0.0
        %2113 = vmatmul.mubr.f32.gmra.mxu0 %v2017
        %v2114 = vpop.f32.mrf.mxu0
        %v2115 = vadd.f32 0.0, %v2114
        %v2116 = vpop.f32.mrf.mxu0
        %2117 = vmatprep.mubr.f32.mxu0 0.0
        %2118 = vmatmul.mubr.f32.gmra.mxu0 %v2020
        %v2119 = vpop.f32.mrf.mxu0
        %v2120 = vadd.f32 0.0, %v2119
        %v2121 = vpop.f32.mrf.mxu0
        %2122 = vmatprep.mubr.f32.mxu0 0.0
        %2123 = vmatmul.mubr.f32.gmra.mxu0 %v2023
        %v2124 = vpop.f32.mrf.mxu0
        %v2125 = vadd.f32 0.0, %v2124
        %v2126 = vpop.f32.mrf.mxu0
        %2127 = vmatprep.mubr.f32.mxu0 0.0
        %2128 = vmatmul.mubr.f32.gmra.mxu0 %v2026
        %v2129 = vpop.f32.mrf.mxu0
        %v2130 = vadd.f32 0.0, %v2129
        %v2131 = vpop.f32.mrf.mxu0
        %2132 = vdwg.mxu0
        %v2133 = vadd.f32 %v1983, %v2095
        %v2134 = vadd.f32 %v1984, %v2100
        %v2135 = vadd.f32 %v1985, %v2105
        %v2136 = vadd.f32 %v1986, %v2110
        %v2137 = vadd.f32 %v1987, %v2115
        %v2138 = vadd.f32 %v1988, %v2120
        %v2139 = vadd.f32 %v1989, %v2125
        %v2140 = vadd.f32 %v1990, %v2130
        %v2141 = vld [vmem:[%s9] sm:$0x1]
        %v2143 = vlaneseq
        %v2144 = vshrl.u32 %v2143, 7
        %v2145 = vsub.s32 0, %v2144
        %v2146 = vrot.slane %v2141, %v2145
        %v2148 = vmul.f32 %v2133, %v2146
        %v2149 = vmul.f32 %v2134, %v2146
        %v2150 = vmul.f32 %v2135, %v2146
        %v2151 = vmul.f32 %v2136, %v2146
        %v2152 = vmul.f32 %v2137, %v2146
        %v2153 = vmul.f32 %v2138, %v2146
        %v2154 = vmul.f32 %v2139, %v2146
        %v2155 = vmul.f32 %v2140, %v2146
        %v2156 = vld [vmem:[%s10] sm:$0x1]
        %v2158 = vlaneseq
        %v2159 = vshrl.u32 %v2158, 7
        %v2160 = vsub.s32 0, %v2159
        %v2161 = vrot.slane %v2156, %v2160
        %v2163 = vadd.f32 %v2148, %v2161
        %v2164 = vadd.f32 %v2149, %v2161
        %v2165 = vadd.f32 %v2150, %v2161
        %v2166 = vadd.f32 %v2151, %v2161
        %v2167 = vadd.f32 %v2152, %v2161
        %v2168 = vadd.f32 %v2153, %v2161
        %v2169 = vadd.f32 %v2154, %v2161
        %v2170 = vadd.f32 %v2155, %v2161
        %v2171 = vadd.f32 %v2163, %v768
        %v2172 = vadd.f32 %v2164, %v769
        %v2173 = vadd.f32 %v2165, %v770
        %v2174 = vadd.f32 %v2166, %v771
        %v2175 = vadd.f32 %v2167, %v772
        %v2176 = vadd.f32 %v2168, %v773
        %v2177 = vadd.f32 %v2169, %v774
        %v2178 = vadd.f32 %v2170, %v775
        %v2179 = vmax.f32 %v2171, 0.0
        %v2180 = vmax.f32 %v2172, 0.0
        %v2181 = vmax.f32 %v2173, 0.0
        %v2182 = vmax.f32 %v2174, 0.0
        %v2183 = vmax.f32 %v2175, 0.0
        %v2184 = vmax.f32 %v2176, 0.0
        %v2185 = vmax.f32 %v2177, 0.0
        %v2186 = vmax.f32 %v2178, 0.0
        %2187 = vst.msk [vmem:[%s394] sm:$0xff] %vm776, %v2179
        %2188 = vst.msk [vmem:[%s394 + $0x8] sm:$0xff] %vm776, %v2180
        %2189 = vst.msk [vmem:[%s394 + $0x10] sm:$0xff] %vm776, %v2181
        %2190 = vst.msk [vmem:[%s394 + $0x18] sm:$0xff] %vm776, %v2182
        %2191 = vst.msk [vmem:[%s394 + $0x20] sm:$0xff] %vm776, %v2183
        %2192 = vst.msk [vmem:[%s394 + $0x28] sm:$0xff] %vm776, %v2184
        %2193 = vst.msk [vmem:[%s394 + $0x30] sm:$0xff] %vm776, %v2185
        %2194 = vst.msk [vmem:[%s394 + $0x38] sm:$0xff] %vm776, %v2186
        %s2195 = sand.u32 %s274, 1
        %s2196 = scalar_lea.sflag [#allocation4], %s2195
        %s2197 = sand.u32 %s274, 1
        %s2198 = smul.addr %s2197, 64
        %s2199 = scalar_lea.vmem [#allocation3], %s2198
        // Predicated region
        $region65: #{resblock_forward.1} parent=63 // pred_check
          %p2200 = pneg %p284
        $region66: #{resblock_forward.1} parent=63 // pred_check_branch
          %2202 = sbr.rel (%p2200) target = $region68
        $region67: #{resblock_forward.1} parent=63 // pred_region
          %s2204 = ssub.s32 1024, 1024
          %2205 = vsyncadd %s2196, %s2204
          %s2206 = smul.addr %s25, 8
          %s2207 = smul.addr %s2206, 128
          %s2208 = scalar_lea.hbm %s11, %s2207
          %s2209 = sshll.u32 %s2199, 4
          %s2210 = int_to_ptr.vmem [resolvable:$true] %s2209
          %2215 = dma.vmem_to_hbm [thread:$0]  %s2210, 1024, %s2208, %s2196, 128, 128, 8
        $region68: #{resblock_forward.1} parent=63 // pred_fallthru
          _
      $region64: #{resblock_forward.1} parent=5 // pred_fallthru
        _
      %p2216 = scmp.le.s32.totalorder 2, %s20
      // Predicated region
      $region69: #{resblock_forward.1} parent=5 // pred_check
        %p2217 = pneg %p2216
      $region70: #{resblock_forward.1} parent=5 // pred_check_branch
        %2219 = sbr.rel (%p2217) target = $region72
      $region71: #{resblock_forward.1} parent=5 // pred_region
        %s2220 = ssub.s32 %s20, 2
        // Predicated region
        $region73: #{resblock_forward.1} parent=71 // pred_check
          %p2221 = pneg %p290
        $region74: #{resblock_forward.1} parent=71 // pred_check_branch
          %2223 = sbr.rel (%p2221) target = $region76
        $region75: #{resblock_forward.1} parent=71 // pred_region
          %s2224 = sand.u32 %s275, 1
          %s2225 = scalar_lea.sflag [#allocation4], %s2224
          %s2226 = sand.u32 %s275, 1
          %s2227 = smul.addr %s2226, 64
          %s2228 = scalar_lea.vmem [#allocation3], %s2227
          %2229 = dma.done %s2225, 1024
        $region76: #{resblock_forward.1} parent=71 // pred_fallthru
          _
      $region72: #{resblock_forward.1} parent=5 // pred_fallthru
        _
    $region6: #{resblock_forward.1} parent=1 // loop_footer
      %s24 = sadd.s32 1, %s20
    $region7: #{resblock_forward.1} parent=1 // loop_footer_branch
      %19 = sbr.rel target = $region3
    $region8: #{resblock_forward.1} parent=1 // loop_exit
      _
    %2230 = vsyncpa [#allocation4], 1
    %s2231 = scalar_lea.sflag [#allocation4], 1
    %2232 = vsyncpa %s2231, 1

</llo_original>
